<compile_context>
chip_gen: v7x
topology: tpu7x:2x2x1
jax: 0.10.0
libtpu: 0.0.40
codegen_flags: <defaults>
</compile_context>

<pallas_src>
import numpy as np
import jax
import jax.numpy as jnp
from jax import lax
from jax.experimental import pallas as pl
from jax.experimental.pallas import tpu as pltpu

CH = 4             # generator.channels
CH_PAD = 8         # channels padded to one sublane tile (zero rows are free)
IMG = 16           # generator.image_size (latent spatial resolution)
HW = IMG * IMG     # pixels per image (lane axis)
OUT_CH = 3         # RGB channels of decode_first_stage output
CUSTOM_STEPS = 5   # opt.custom_steps (DDIM steps)
NUM_TIMESTEPS = 1000
SCALE_FACTOR = 0.18215
INV_SCALE = float(1.0 / SCALE_FACTOR)
ETA = 0.0          # opt.eta -> deterministic DDIM (no noise term)
SCALS_PER_STEP = 5

TAPS = [(dy, dx) for dy in (-1, 0, 1) for dx in (-1, 0, 1)]
K_STACK = 9 * CH_PAD   # contraction length of the single fused conv matmul


# ------------------------------- fused kernel -------------------------------

def latentdiff_kernel(scal_ref, x_ref, masks_ref, w_eps_ref, b_eps_ref,
                      w_dec_ref, b_dec_ref, out_ref):
    """Fused DDIM sampling (eta=0) + synthetic decoder + post_process for one
    grid cell.  Layout: channels on sublanes, (images*H*W) pixels on lanes."""
    n = x_ref.shape[-1]                       # lanes per grid cell

    def conv3x3(x, w, bias):
        # x: (CH_PAD, n), w: (C_out, 9*CH_PAD) -> (C_out, n).
        # Each tap is a circular lane roll; the precomputed masks zero every
        # wrapped / out-of-image / cross-image position, so this is exactly a
        # same-padded 3x3 conv.  All 9 taps feed ONE MXU matmul.
        parts = []
        for dy, dx in TAPS:
            d = dy * IMG + dx
            if d == 0:
                parts.append(x)
            else:
                parts.append(pltpu.roll(x, shift=(-d) % n, axis=1))
        stacked = jnp.concatenate(parts, axis=0) * masks_ref[...]
        return jnp.dot(w, stacked, preferred_element_type=jnp.float32) + bias

    # ---- hoisted loop invariants (JAX does not CSE broadcast_in_dim) -------
    w_eps = w_eps_ref[...]
    eps_bias = jnp.broadcast_to(b_eps_ref[...], (CH_PAD, n))

    # ---- DDIM loop, eta = 0 (schedule entries already in execution order) --
    def ddim_step(s, x):
        base = s * SCALS_PER_STEP
        temb = scal_ref[base + 0]          # synthetic time embedding (scalar)
        inv_sqrt_at = scal_ref[base + 1]   # 1/sqrt(alpha_cumprod_t)
        sqrt_1mat = scal_ref[base + 2]
        sqrt_aprev = scal_ref[base + 3]
        sqrt_1maprev = scal_ref[base + 4]
        eps = conv3x3(x, w_eps, eps_bias) + temb       # eps_theta(x_t, t)
        pred_x0 = (x - sqrt_1mat * eps) * inv_sqrt_at  # DDIM predicted x0
        # eta = 0 -> sigma_t = 0, no noise term
        return sqrt_aprev * pred_x0 + sqrt_1maprev * eps

    x = lax.fori_loop(0, CUSTOM_STEPS, ddim_step, x_ref[0], unroll=True)

    # ---- decode_first_stage: z / scale_factor -> decoder conv -> tanh ------
    x = x * INV_SCALE
    dec_bias = jnp.broadcast_to(b_dec_ref[...], (OUT_CH, n))
    img = jnp.tanh(conv3x3(x, w_dec_ref[...], dec_bias))   # decoder out in [-1,1]
    # ---- post_process: Normalize(mean=-1, std=2) == (img + 1) / 2 ----------
    out_ref[0] = (img + 1.0) * 0.5


# --------------------------- host-side packing helpers ----------------------

def _build_masks(n_lanes):
    """(9*CH_PAD, n_lanes) f32 validity mask per tap (tiled per HW segment)."""
    lane = np.arange(n_lanes)
    p = lane % HW
    xc = p % IMG
    yc = p // IMG
    m = np.zeros((9 * CH_PAD, n_lanes), np.float32)
    for t, (dy, dx) in enumerate(TAPS):
        ok = ((xc + dx >= 0) & (xc + dx < IMG) &
              (yc + dy >= 0) & (yc + dy < IMG))
        m[t * CH_PAD:(t + 1) * CH_PAD, :] = ok.astype(np.float32)[None, :]
    return m


def _pack_taps(w, out_rows):
    """w: (9, c_out, CH) -> (out_rows, 9*CH_PAD): one dot contracts taps*chans."""
    t, c_out, c_in = w.shape
    wp = jnp.zeros((t, out_rows, CH_PAD), jnp.float32)
    wp = wp.at[:, :c_out, :c_in].set(w)
    return jnp.transpose(wp, (1, 0, 2)).reshape(out_rows, t * CH_PAD)


# ------------------------------ forward wrapper ------------------------------

def latentdiff_forward(z, step_scalars, eps_w, eps_b, dec_w, dec_b):
    B = z.shape[0]
    cells = 2 if (B >= 2 and B % 2 == 0) else 1   # one grid cell per v7x TC
    ipc = B // cells                              # images folded onto lanes/cell
    n = ipc * HW

    # z.view(bsz, channels, image_size, image_size) with batch folded onto the
    # lane axis and channels zero-padded to one sublane tile.
    x = z.reshape(B, CH, HW).reshape(cells, ipc, CH, HW)
    x = jnp.transpose(x, (0, 2, 1, 3)).reshape(cells, CH, n)
    x_cells = jnp.zeros((cells, CH_PAD, n), jnp.float32).at[:, :CH, :].set(x)

    masks = jnp.asarray(_build_masks(n))          # constant under jit
    w_eps_p = _pack_taps(eps_w, CH_PAD)
    b_eps_p = jnp.zeros((CH_PAD, 1), jnp.float32).at[:CH, :].set(eps_b)
    w_dec_p = _pack_taps(dec_w, OUT_CH)

    out = pl.pallas_call(
        latentdiff_kernel,
        out_shape=jax.ShapeDtypeStruct((cells, OUT_CH, n), jnp.float32),
        grid=(cells,),
        in_specs=[
            pl.BlockSpec(memory_space=pltpu.MemorySpace.SMEM),        # schedule
            pl.BlockSpec((1, CH_PAD, n), lambda c: (c, 0, 0)),        # x_T
            pl.BlockSpec((K_STACK, n), lambda c: (0, 0)),             # tap masks
            pl.BlockSpec((CH_PAD, K_STACK), lambda c: (0, 0)),        # eps conv w
            pl.BlockSpec((CH_PAD, 1), lambda c: (0, 0)),              # eps conv b
            pl.BlockSpec((OUT_CH, K_STACK), lambda c: (0, 0)),        # dec conv w
            pl.BlockSpec((OUT_CH, 1), lambda c: (0, 0)),              # dec conv b
        ],
        out_specs=pl.BlockSpec((1, OUT_CH, n), lambda c: (c, 0, 0)),
        compiler_params=pltpu.CompilerParams(
            dimension_semantics=("parallel",)),
    )(step_scalars, x_cells, masks, w_eps_p, b_eps_p, w_dec_p, dec_b)

    out = out.reshape(cells, OUT_CH, ipc, HW)
    out = jnp.transpose(out, (0, 2, 1, 3)).reshape(B, OUT_CH, IMG, IMG)
    return out


# ------------------------------ DDIM schedule --------------------------------

def _ddim_schedule(steps):
    """Flat 1-D schedule, per executed step s (timestep high -> low):
    [temb, 1/sqrt(a_t), sqrt(1-a_t), sqrt(a_prev), sqrt(1-a_prev)]."""
    betas = np.linspace(1e-4, 2e-2, NUM_TIMESTEPS, dtype=np.float64)
    alphas_cumprod = np.cumprod(1.0 - betas)
    c = NUM_TIMESTEPS // steps
    ts = np.arange(0, steps) * c + 1
    a = alphas_cumprod[ts]
    a_prev = np.concatenate([[alphas_cumprod[0]], a[:-1]])
    scal = np.zeros((steps, SCALS_PER_STEP), np.float32)
    scal[:, 0] = np.sin(ts / float(NUM_TIMESTEPS))   # synthetic time embedding
    scal[:, 1] = 1.0 / np.sqrt(a)                    # reciprocal precomputed on host
    scal[:, 2] = np.sqrt(1.0 - a)
    scal[:, 3] = np.sqrt(a_prev)
    scal[:, 4] = np.sqrt(1.0 - a_prev)
    # execution order t high -> low; flatten to 1-D (tiny SMEM footprint)
    return jnp.asarray(scal[::-1].copy().reshape(-1))


if __name__ == "__main__":
    key = jax.random.PRNGKey(0)
    kz, kw1, kw2 = jax.random.split(key, 3)

    latent_dim = CH * IMG * IMG                 # == self.latent_dim
    z = jax.random.normal(kz, (2, latent_dim), jnp.float32)

    # Deterministic synthetic parameters (eps-model conv3x3 and decoder conv3x3)
    eps_w = 0.05 * jax.random.normal(kw1, (9, CH, CH), jnp.float32)
    eps_b = jnp.zeros((CH, 1), jnp.float32)
    dec_w = 0.05 * jax.random.normal(kw2, (9, OUT_CH, CH), jnp.float32)
    dec_b = jnp.zeros((OUT_CH, 1), jnp.float32)

    step_scalars = _ddim_schedule(CUSTOM_STEPS)

    fwd = jax.jit(latentdiff_forward)
    img = fwd(z, step_scalars, eps_w, eps_b, dec_w, dec_b)
    jax.block_until_ready(img)

    assert img.shape == (2, OUT_CH, IMG, IMG)
    assert bool(jnp.all(jnp.isfinite(img)))
    print("KERNEL_OK")
</pallas_src>

<mosaic_0001>
module attributes {stable_mosaic.version = 11 : i64} {
  func.func @latentdiff_kernel(%arg0: i32, %arg1: memref<25xf32, #tpu.memory_space<smem>>, %arg2: memref<1x8x256xf32, #tpu.memory_space<vmem>>, %arg3: memref<72x256xf32, #tpu.memory_space<vmem>>, %arg4: memref<8x72xf32, #tpu.memory_space<vmem>>, %arg5: memref<8x1xf32, #tpu.memory_space<vmem>>, %arg6: memref<3x72xf32, #tpu.memory_space<vmem>>, %arg7: memref<3x1xf32, #tpu.memory_space<vmem>>, %arg8: memref<1x3x256xf32, #tpu.memory_space<vmem>>) attributes {dimension_semantics = [#tpu.dimension_semantics<parallel>], iteration_bounds = array<i64: 2>, scalar_prefetch = 0 : i64, scratch_operands = 0 : i64, tpu.core_type = #tpu.core_type<tc>, window_params = [{transform_indices = @transform_0, window_bounds = array<i64: 25>}, {transform_indices = @transform_1, window_bounds = array<i64: 1, 8, 256>}, {pipeline_mode = #tpu.pipeline_mode<synchronous>, transform_indices = @transform_2, window_bounds = array<i64: 72, 256>}, {pipeline_mode = #tpu.pipeline_mode<synchronous>, transform_indices = @transform_3, window_bounds = array<i64: 8, 72>}, {pipeline_mode = #tpu.pipeline_mode<synchronous>, transform_indices = @transform_4, window_bounds = array<i64: 8, 1>}, {pipeline_mode = #tpu.pipeline_mode<synchronous>, transform_indices = @transform_5, window_bounds = array<i64: 3, 72>}, {pipeline_mode = #tpu.pipeline_mode<synchronous>, transform_indices = @transform_6, window_bounds = array<i64: 3, 1>}, {transform_indices = @transform_7, window_bounds = array<i64: 1, 3, 256>}]} {
    %c0 = arith.constant 0 : index
    %c0_0 = arith.constant 0 : index
    %0 = vector.load %arg4[%c0, %c0_0] : memref<8x72xf32, #tpu.memory_space<vmem>>, vector<8x72xf32>
    %c0_1 = arith.constant 0 : index
    %c0_2 = arith.constant 0 : index
    %1 = vector.load %arg5[%c0_1, %c0_2] : memref<8x1xf32, #tpu.memory_space<vmem>>, vector<8x1xf32>
    %2 = vector.shape_cast %1 : vector<8x1xf32> to vector<8x1xf32>
    %3 = vector.broadcast %2 : vector<8x1xf32> to vector<8x256xf32>
    %c0_3 = arith.constant 0 : index
    %c0_4 = arith.constant 0 : index
    %c0_5 = arith.constant 0 : index
    %4 = vector.load %arg2[%c0_3, %c0_4, %c0_5] : memref<1x8x256xf32, #tpu.memory_space<vmem>>, vector<1x8x256xf32>
    %5 = vector.shape_cast %4 : vector<1x8x256xf32> to vector<8x256xf32>
    %c0_i32 = arith.constant 0 : i32
    %c5_i32 = arith.constant 5 : i32
    %6 = arith.muli %c0_i32, %c5_i32 : i32
    %c0_i32_6 = arith.constant 0 : i32
    %7 = arith.addi %6, %c0_i32_6 : i32
    %8 = arith.index_cast %7 : i32 to index
    %9 = memref.load %arg1[%8] : memref<25xf32, #tpu.memory_space<smem>>
    %c1_i32 = arith.constant 1 : i32
    %10 = arith.addi %6, %c1_i32 : i32
    %11 = arith.index_cast %10 : i32 to index
    %12 = memref.load %arg1[%11] : memref<25xf32, #tpu.memory_space<smem>>
    %c2_i32 = arith.constant 2 : i32
    %13 = arith.addi %6, %c2_i32 : i32
    %14 = arith.index_cast %13 : i32 to index
    %15 = memref.load %arg1[%14] : memref<25xf32, #tpu.memory_space<smem>>
    %c3_i32 = arith.constant 3 : i32
    %16 = arith.addi %6, %c3_i32 : i32
    %17 = arith.index_cast %16 : i32 to index
    %18 = memref.load %arg1[%17] : memref<25xf32, #tpu.memory_space<smem>>
    %c4_i32 = arith.constant 4 : i32
    %19 = arith.addi %6, %c4_i32 : i32
    %20 = arith.index_cast %19 : i32 to index
    %21 = memref.load %arg1[%20] : memref<25xf32, #tpu.memory_space<smem>>
    %c17_i32 = arith.constant 17 : i32
    %22 = tpu.dynamic_rotate %5 by %c17_i32 dim 1 : vector<8x256xf32>, i32 -> vector<8x256xf32>
    %c16_i32 = arith.constant 16 : i32
    %23 = tpu.dynamic_rotate %5 by %c16_i32 dim 1 : vector<8x256xf32>, i32 -> vector<8x256xf32>
    %c15_i32 = arith.constant 15 : i32
    %24 = tpu.dynamic_rotate %5 by %c15_i32 dim 1 : vector<8x256xf32>, i32 -> vector<8x256xf32>
    %c1_i32_7 = arith.constant 1 : i32
    %25 = tpu.dynamic_rotate %5 by %c1_i32_7 dim 1 : vector<8x256xf32>, i32 -> vector<8x256xf32>
    %c255_i32 = arith.constant 255 : i32
    %26 = tpu.dynamic_rotate %5 by %c255_i32 dim 1 : vector<8x256xf32>, i32 -> vector<8x256xf32>
    %c241_i32 = arith.constant 241 : i32
    %27 = tpu.dynamic_rotate %5 by %c241_i32 dim 1 : vector<8x256xf32>, i32 -> vector<8x256xf32>
    %c240_i32 = arith.constant 240 : i32
    %28 = tpu.dynamic_rotate %5 by %c240_i32 dim 1 : vector<8x256xf32>, i32 -> vector<8x256xf32>
    %c239_i32 = arith.constant 239 : i32
    %29 = tpu.dynamic_rotate %5 by %c239_i32 dim 1 : vector<8x256xf32>, i32 -> vector<8x256xf32>
    %30 = tpu.concatenate %22, %23, %24, %25, %5, %26, %27, %28, %29 in 0 : vector<8x256xf32>, vector<8x256xf32>, vector<8x256xf32>, vector<8x256xf32>, vector<8x256xf32>, vector<8x256xf32>, vector<8x256xf32>, vector<8x256xf32>, vector<8x256xf32> -> vector<72x256xf32>
    %c0_8 = arith.constant 0 : index
    %c0_9 = arith.constant 0 : index
    %31 = vector.load %arg3[%c0_8, %c0_9] : memref<72x256xf32, #tpu.memory_space<vmem>>, vector<72x256xf32>
    %32 = arith.mulf %30, %31 : vector<72x256xf32>
    %cst = arith.constant dense<0.000000e+00> : vector<8x256xf32>
    %33 = tpu.matmul %0, %32, %cst {dimension_numbers = #tpu.dot_dimension_numbers<[1], [0], [0], [1], [0, 0, 1, 1], [], []>} : vector<8x72xf32>, vector<72x256xf32>, vector<8x256xf32> -> vector<8x256xf32>
    %34 = arith.addf %33, %3 : vector<8x256xf32>
    %35 = vector.broadcast %9 : f32 to vector<8x256xf32>
    %36 = arith.addf %34, %35 : vector<8x256xf32>
    %37 = vector.broadcast %15 : f32 to vector<8x256xf32>
    %38 = arith.mulf %37, %36 : vector<8x256xf32>
    %39 = arith.subf %5, %38 : vector<8x256xf32>
    %40 = vector.broadcast %12 : f32 to vector<8x256xf32>
    %41 = arith.mulf %39, %40 : vector<8x256xf32>
    %42 = vector.broadcast %18 : f32 to vector<8x256xf32>
    %43 = arith.mulf %42, %41 : vector<8x256xf32>
    %44 = vector.broadcast %21 : f32 to vector<8x256xf32>
    %45 = arith.mulf %44, %36 : vector<8x256xf32>
    %46 = arith.addf %43, %45 : vector<8x256xf32>
    %c1_i32_10 = arith.constant 1 : i32
    %c5_i32_11 = arith.constant 5 : i32
    %47 = arith.muli %c1_i32_10, %c5_i32_11 : i32
    %c0_i32_12 = arith.constant 0 : i32
    %48 = arith.addi %47, %c0_i32_12 : i32
    %49 = arith.index_cast %48 : i32 to index
    %50 = memref.load %arg1[%49] : memref<25xf32, #tpu.memory_space<smem>>
    %c1_i32_13 = arith.constant 1 : i32
    %51 = arith.addi %47, %c1_i32_13 : i32
    %52 = arith.index_cast %51 : i32 to index
    %53 = memref.load %arg1[%52] : memref<25xf32, #tpu.memory_space<smem>>
    %c2_i32_14 = arith.constant 2 : i32
    %54 = arith.addi %47, %c2_i32_14 : i32
    %55 = arith.index_cast %54 : i32 to index
    %56 = memref.load %arg1[%55] : memref<25xf32, #tpu.memory_space<smem>>
    %c3_i32_15 = arith.constant 3 : i32
    %57 = arith.addi %47, %c3_i32_15 : i32
    %58 = arith.index_cast %57 : i32 to index
    %59 = memref.load %arg1[%58] : memref<25xf32, #tpu.memory_space<smem>>
    %c4_i32_16 = arith.constant 4 : i32
    %60 = arith.addi %47, %c4_i32_16 : i32
    %61 = arith.index_cast %60 : i32 to index
    %62 = memref.load %arg1[%61] : memref<25xf32, #tpu.memory_space<smem>>
    %c17_i32_17 = arith.constant 17 : i32
    %63 = tpu.dynamic_rotate %46 by %c17_i32_17 dim 1 : vector<8x256xf32>, i32 -> vector<8x256xf32>
    %c16_i32_18 = arith.constant 16 : i32
    %64 = tpu.dynamic_rotate %46 by %c16_i32_18 dim 1 : vector<8x256xf32>, i32 -> vector<8x256xf32>
    %c15_i32_19 = arith.constant 15 : i32
    %65 = tpu.dynamic_rotate %46 by %c15_i32_19 dim 1 : vector<8x256xf32>, i32 -> vector<8x256xf32>
    %c1_i32_20 = arith.constant 1 : i32
    %66 = tpu.dynamic_rotate %46 by %c1_i32_20 dim 1 : vector<8x256xf32>, i32 -> vector<8x256xf32>
    %c255_i32_21 = arith.constant 255 : i32
    %67 = tpu.dynamic_rotate %46 by %c255_i32_21 dim 1 : vector<8x256xf32>, i32 -> vector<8x256xf32>
    %c241_i32_22 = arith.constant 241 : i32
    %68 = tpu.dynamic_rotate %46 by %c241_i32_22 dim 1 : vector<8x256xf32>, i32 -> vector<8x256xf32>
    %c240_i32_23 = arith.constant 240 : i32
    %69 = tpu.dynamic_rotate %46 by %c240_i32_23 dim 1 : vector<8x256xf32>, i32 -> vector<8x256xf32>
    %c239_i32_24 = arith.constant 239 : i32
    %70 = tpu.dynamic_rotate %46 by %c239_i32_24 dim 1 : vector<8x256xf32>, i32 -> vector<8x256xf32>
    %71 = tpu.concatenate %63, %64, %65, %66, %46, %67, %68, %69, %70 in 0 : vector<8x256xf32>, vector<8x256xf32>, vector<8x256xf32>, vector<8x256xf32>, vector<8x256xf32>, vector<8x256xf32>, vector<8x256xf32>, vector<8x256xf32>, vector<8x256xf32> -> vector<72x256xf32>
    %c0_25 = arith.constant 0 : index
    %c0_26 = arith.constant 0 : index
    %72 = vector.load %arg3[%c0_25, %c0_26] : memref<72x256xf32, #tpu.memory_space<vmem>>, vector<72x256xf32>
    %73 = arith.mulf %71, %72 : vector<72x256xf32>
    %cst_27 = arith.constant dense<0.000000e+00> : vector<8x256xf32>
    %74 = tpu.matmul %0, %73, %cst_27 {dimension_numbers = #tpu.dot_dimension_numbers<[1], [0], [0], [1], [0, 0, 1, 1], [], []>} : vector<8x72xf32>, vector<72x256xf32>, vector<8x256xf32> -> vector<8x256xf32>
    %75 = arith.addf %74, %3 : vector<8x256xf32>
    %76 = vector.broadcast %50 : f32 to vector<8x256xf32>
    %77 = arith.addf %75, %76 : vector<8x256xf32>
    %78 = vector.broadcast %56 : f32 to vector<8x256xf32>
    %79 = arith.mulf %78, %77 : vector<8x256xf32>
    %80 = arith.subf %46, %79 : vector<8x256xf32>
    %81 = vector.broadcast %53 : f32 to vector<8x256xf32>
    %82 = arith.mulf %80, %81 : vector<8x256xf32>
    %83 = vector.broadcast %59 : f32 to vector<8x256xf32>
    %84 = arith.mulf %83, %82 : vector<8x256xf32>
    %85 = vector.broadcast %62 : f32 to vector<8x256xf32>
    %86 = arith.mulf %85, %77 : vector<8x256xf32>
    %87 = arith.addf %84, %86 : vector<8x256xf32>
    %c2_i32_28 = arith.constant 2 : i32
    %c5_i32_29 = arith.constant 5 : i32
    %88 = arith.muli %c2_i32_28, %c5_i32_29 : i32
    %c0_i32_30 = arith.constant 0 : i32
    %89 = arith.addi %88, %c0_i32_30 : i32
    %90 = arith.index_cast %89 : i32 to index
    %91 = memref.load %arg1[%90] : memref<25xf32, #tpu.memory_space<smem>>
    %c1_i32_31 = arith.constant 1 : i32
    %92 = arith.addi %88, %c1_i32_31 : i32
    %93 = arith.index_cast %92 : i32 to index
    %94 = memref.load %arg1[%93] : memref<25xf32, #tpu.memory_space<smem>>
    %c2_i32_32 = arith.constant 2 : i32
    %95 = arith.addi %88, %c2_i32_32 : i32
    %96 = arith.index_cast %95 : i32 to index
    %97 = memref.load %arg1[%96] : memref<25xf32, #tpu.memory_space<smem>>
    %c3_i32_33 = arith.constant 3 : i32
    %98 = arith.addi %88, %c3_i32_33 : i32
    %99 = arith.index_cast %98 : i32 to index
    %100 = memref.load %arg1[%99] : memref<25xf32, #tpu.memory_space<smem>>
    %c4_i32_34 = arith.constant 4 : i32
    %101 = arith.addi %88, %c4_i32_34 : i32
    %102 = arith.index_cast %101 : i32 to index
    %103 = memref.load %arg1[%102] : memref<25xf32, #tpu.memory_space<smem>>
    %c17_i32_35 = arith.constant 17 : i32
    %104 = tpu.dynamic_rotate %87 by %c17_i32_35 dim 1 : vector<8x256xf32>, i32 -> vector<8x256xf32>
    %c16_i32_36 = arith.constant 16 : i32
    %105 = tpu.dynamic_rotate %87 by %c16_i32_36 dim 1 : vector<8x256xf32>, i32 -> vector<8x256xf32>
    %c15_i32_37 = arith.constant 15 : i32
    %106 = tpu.dynamic_rotate %87 by %c15_i32_37 dim 1 : vector<8x256xf32>, i32 -> vector<8x256xf32>
    %c1_i32_38 = arith.constant 1 : i32
    %107 = tpu.dynamic_rotate %87 by %c1_i32_38 dim 1 : vector<8x256xf32>, i32 -> vector<8x256xf32>
    %c255_i32_39 = arith.constant 255 : i32
    %108 = tpu.dynamic_rotate %87 by %c255_i32_39 dim 1 : vector<8x256xf32>, i32 -> vector<8x256xf32>
    %c241_i32_40 = arith.constant 241 : i32
    %109 = tpu.dynamic_rotate %87 by %c241_i32_40 dim 1 : vector<8x256xf32>, i32 -> vector<8x256xf32>
    %c240_i32_41 = arith.constant 240 : i32
    %110 = tpu.dynamic_rotate %87 by %c240_i32_41 dim 1 : vector<8x256xf32>, i32 -> vector<8x256xf32>
    %c239_i32_42 = arith.constant 239 : i32
    %111 = tpu.dynamic_rotate %87 by %c239_i32_42 dim 1 : vector<8x256xf32>, i32 -> vector<8x256xf32>
    %112 = tpu.concatenate %104, %105, %106, %107, %87, %108, %109, %110, %111 in 0 : vector<8x256xf32>, vector<8x256xf32>, vector<8x256xf32>, vector<8x256xf32>, vector<8x256xf32>, vector<8x256xf32>, vector<8x256xf32>, vector<8x256xf32>, vector<8x256xf32> -> vector<72x256xf32>
    %c0_43 = arith.constant 0 : index
    %c0_44 = arith.constant 0 : index
    %113 = vector.load %arg3[%c0_43, %c0_44] : memref<72x256xf32, #tpu.memory_space<vmem>>, vector<72x256xf32>
    %114 = arith.mulf %112, %113 : vector<72x256xf32>
    %cst_45 = arith.constant dense<0.000000e+00> : vector<8x256xf32>
    %115 = tpu.matmul %0, %114, %cst_45 {dimension_numbers = #tpu.dot_dimension_numbers<[1], [0], [0], [1], [0, 0, 1, 1], [], []>} : vector<8x72xf32>, vector<72x256xf32>, vector<8x256xf32> -> vector<8x256xf32>
    %116 = arith.addf %115, %3 : vector<8x256xf32>
    %117 = vector.broadcast %91 : f32 to vector<8x256xf32>
    %118 = arith.addf %116, %117 : vector<8x256xf32>
    %119 = vector.broadcast %97 : f32 to vector<8x256xf32>
    %120 = arith.mulf %119, %118 : vector<8x256xf32>
    %121 = arith.subf %87, %120 : vector<8x256xf32>
    %122 = vector.broadcast %94 : f32 to vector<8x256xf32>
    %123 = arith.mulf %121, %122 : vector<8x256xf32>
    %124 = vector.broadcast %100 : f32 to vector<8x256xf32>
    %125 = arith.mulf %124, %123 : vector<8x256xf32>
    %126 = vector.broadcast %103 : f32 to vector<8x256xf32>
    %127 = arith.mulf %126, %118 : vector<8x256xf32>
    %128 = arith.addf %125, %127 : vector<8x256xf32>
    %c3_i32_46 = arith.constant 3 : i32
    %c5_i32_47 = arith.constant 5 : i32
    %129 = arith.muli %c3_i32_46, %c5_i32_47 : i32
    %c0_i32_48 = arith.constant 0 : i32
    %130 = arith.addi %129, %c0_i32_48 : i32
    %131 = arith.index_cast %130 : i32 to index
    %132 = memref.load %arg1[%131] : memref<25xf32, #tpu.memory_space<smem>>
    %c1_i32_49 = arith.constant 1 : i32
    %133 = arith.addi %129, %c1_i32_49 : i32
    %134 = arith.index_cast %133 : i32 to index
    %135 = memref.load %arg1[%134] : memref<25xf32, #tpu.memory_space<smem>>
    %c2_i32_50 = arith.constant 2 : i32
    %136 = arith.addi %129, %c2_i32_50 : i32
    %137 = arith.index_cast %136 : i32 to index
    %138 = memref.load %arg1[%137] : memref<25xf32, #tpu.memory_space<smem>>
    %c3_i32_51 = arith.constant 3 : i32
    %139 = arith.addi %129, %c3_i32_51 : i32
    %140 = arith.index_cast %139 : i32 to index
    %141 = memref.load %arg1[%140] : memref<25xf32, #tpu.memory_space<smem>>
    %c4_i32_52 = arith.constant 4 : i32
    %142 = arith.addi %129, %c4_i32_52 : i32
    %143 = arith.index_cast %142 : i32 to index
    %144 = memref.load %arg1[%143] : memref<25xf32, #tpu.memory_space<smem>>
    %c17_i32_53 = arith.constant 17 : i32
    %145 = tpu.dynamic_rotate %128 by %c17_i32_53 dim 1 : vector<8x256xf32>, i32 -> vector<8x256xf32>
    %c16_i32_54 = arith.constant 16 : i32
    %146 = tpu.dynamic_rotate %128 by %c16_i32_54 dim 1 : vector<8x256xf32>, i32 -> vector<8x256xf32>
    %c15_i32_55 = arith.constant 15 : i32
    %147 = tpu.dynamic_rotate %128 by %c15_i32_55 dim 1 : vector<8x256xf32>, i32 -> vector<8x256xf32>
    %c1_i32_56 = arith.constant 1 : i32
    %148 = tpu.dynamic_rotate %128 by %c1_i32_56 dim 1 : vector<8x256xf32>, i32 -> vector<8x256xf32>
    %c255_i32_57 = arith.constant 255 : i32
    %149 = tpu.dynamic_rotate %128 by %c255_i32_57 dim 1 : vector<8x256xf32>, i32 -> vector<8x256xf32>
    %c241_i32_58 = arith.constant 241 : i32
    %150 = tpu.dynamic_rotate %128 by %c241_i32_58 dim 1 : vector<8x256xf32>, i32 -> vector<8x256xf32>
    %c240_i32_59 = arith.constant 240 : i32
    %151 = tpu.dynamic_rotate %128 by %c240_i32_59 dim 1 : vector<8x256xf32>, i32 -> vector<8x256xf32>
    %c239_i32_60 = arith.constant 239 : i32
    %152 = tpu.dynamic_rotate %128 by %c239_i32_60 dim 1 : vector<8x256xf32>, i32 -> vector<8x256xf32>
    %153 = tpu.concatenate %145, %146, %147, %148, %128, %149, %150, %151, %152 in 0 : vector<8x256xf32>, vector<8x256xf32>, vector<8x256xf32>, vector<8x256xf32>, vector<8x256xf32>, vector<8x256xf32>, vector<8x256xf32>, vector<8x256xf32>, vector<8x256xf32> -> vector<72x256xf32>
    %c0_61 = arith.constant 0 : index
    %c0_62 = arith.constant 0 : index
    %154 = vector.load %arg3[%c0_61, %c0_62] : memref<72x256xf32, #tpu.memory_space<vmem>>, vector<72x256xf32>
    %155 = arith.mulf %153, %154 : vector<72x256xf32>
    %cst_63 = arith.constant dense<0.000000e+00> : vector<8x256xf32>
    %156 = tpu.matmul %0, %155, %cst_63 {dimension_numbers = #tpu.dot_dimension_numbers<[1], [0], [0], [1], [0, 0, 1, 1], [], []>} : vector<8x72xf32>, vector<72x256xf32>, vector<8x256xf32> -> vector<8x256xf32>
    %157 = arith.addf %156, %3 : vector<8x256xf32>
    %158 = vector.broadcast %132 : f32 to vector<8x256xf32>
    %159 = arith.addf %157, %158 : vector<8x256xf32>
    %160 = vector.broadcast %138 : f32 to vector<8x256xf32>
    %161 = arith.mulf %160, %159 : vector<8x256xf32>
    %162 = arith.subf %128, %161 : vector<8x256xf32>
    %163 = vector.broadcast %135 : f32 to vector<8x256xf32>
    %164 = arith.mulf %162, %163 : vector<8x256xf32>
    %165 = vector.broadcast %141 : f32 to vector<8x256xf32>
    %166 = arith.mulf %165, %164 : vector<8x256xf32>
    %167 = vector.broadcast %144 : f32 to vector<8x256xf32>
    %168 = arith.mulf %167, %159 : vector<8x256xf32>
    %169 = arith.addf %166, %168 : vector<8x256xf32>
    %c4_i32_64 = arith.constant 4 : i32
    %c5_i32_65 = arith.constant 5 : i32
    %170 = arith.muli %c4_i32_64, %c5_i32_65 : i32
    %c0_i32_66 = arith.constant 0 : i32
    %171 = arith.addi %170, %c0_i32_66 : i32
    %172 = arith.index_cast %171 : i32 to index
    %173 = memref.load %arg1[%172] : memref<25xf32, #tpu.memory_space<smem>>
    %c1_i32_67 = arith.constant 1 : i32
    %174 = arith.addi %170, %c1_i32_67 : i32
    %175 = arith.index_cast %174 : i32 to index
    %176 = memref.load %arg1[%175] : memref<25xf32, #tpu.memory_space<smem>>
    %c2_i32_68 = arith.constant 2 : i32
    %177 = arith.addi %170, %c2_i32_68 : i32
    %178 = arith.index_cast %177 : i32 to index
    %179 = memref.load %arg1[%178] : memref<25xf32, #tpu.memory_space<smem>>
    %c3_i32_69 = arith.constant 3 : i32
    %180 = arith.addi %170, %c3_i32_69 : i32
    %181 = arith.index_cast %180 : i32 to index
    %182 = memref.load %arg1[%181] : memref<25xf32, #tpu.memory_space<smem>>
    %c4_i32_70 = arith.constant 4 : i32
    %183 = arith.addi %170, %c4_i32_70 : i32
    %184 = arith.index_cast %183 : i32 to index
    %185 = memref.load %arg1[%184] : memref<25xf32, #tpu.memory_space<smem>>
    %c17_i32_71 = arith.constant 17 : i32
    %186 = tpu.dynamic_rotate %169 by %c17_i32_71 dim 1 : vector<8x256xf32>, i32 -> vector<8x256xf32>
    %c16_i32_72 = arith.constant 16 : i32
    %187 = tpu.dynamic_rotate %169 by %c16_i32_72 dim 1 : vector<8x256xf32>, i32 -> vector<8x256xf32>
    %c15_i32_73 = arith.constant 15 : i32
    %188 = tpu.dynamic_rotate %169 by %c15_i32_73 dim 1 : vector<8x256xf32>, i32 -> vector<8x256xf32>
    %c1_i32_74 = arith.constant 1 : i32
    %189 = tpu.dynamic_rotate %169 by %c1_i32_74 dim 1 : vector<8x256xf32>, i32 -> vector<8x256xf32>
    %c255_i32_75 = arith.constant 255 : i32
    %190 = tpu.dynamic_rotate %169 by %c255_i32_75 dim 1 : vector<8x256xf32>, i32 -> vector<8x256xf32>
    %c241_i32_76 = arith.constant 241 : i32
    %191 = tpu.dynamic_rotate %169 by %c241_i32_76 dim 1 : vector<8x256xf32>, i32 -> vector<8x256xf32>
    %c240_i32_77 = arith.constant 240 : i32
    %192 = tpu.dynamic_rotate %169 by %c240_i32_77 dim 1 : vector<8x256xf32>, i32 -> vector<8x256xf32>
    %c239_i32_78 = arith.constant 239 : i32
    %193 = tpu.dynamic_rotate %169 by %c239_i32_78 dim 1 : vector<8x256xf32>, i32 -> vector<8x256xf32>
    %194 = tpu.concatenate %186, %187, %188, %189, %169, %190, %191, %192, %193 in 0 : vector<8x256xf32>, vector<8x256xf32>, vector<8x256xf32>, vector<8x256xf32>, vector<8x256xf32>, vector<8x256xf32>, vector<8x256xf32>, vector<8x256xf32>, vector<8x256xf32> -> vector<72x256xf32>
    %c0_79 = arith.constant 0 : index
    %c0_80 = arith.constant 0 : index
    %195 = vector.load %arg3[%c0_79, %c0_80] : memref<72x256xf32, #tpu.memory_space<vmem>>, vector<72x256xf32>
    %196 = arith.mulf %194, %195 : vector<72x256xf32>
    %cst_81 = arith.constant dense<0.000000e+00> : vector<8x256xf32>
    %197 = tpu.matmul %0, %196, %cst_81 {dimension_numbers = #tpu.dot_dimension_numbers<[1], [0], [0], [1], [0, 0, 1, 1], [], []>} : vector<8x72xf32>, vector<72x256xf32>, vector<8x256xf32> -> vector<8x256xf32>
    %198 = arith.addf %197, %3 : vector<8x256xf32>
    %199 = vector.broadcast %173 : f32 to vector<8x256xf32>
    %200 = arith.addf %198, %199 : vector<8x256xf32>
    %201 = vector.broadcast %179 : f32 to vector<8x256xf32>
    %202 = arith.mulf %201, %200 : vector<8x256xf32>
    %203 = arith.subf %169, %202 : vector<8x256xf32>
    %204 = vector.broadcast %176 : f32 to vector<8x256xf32>
    %205 = arith.mulf %203, %204 : vector<8x256xf32>
    %206 = vector.broadcast %182 : f32 to vector<8x256xf32>
    %207 = arith.mulf %206, %205 : vector<8x256xf32>
    %208 = vector.broadcast %185 : f32 to vector<8x256xf32>
    %209 = arith.mulf %208, %200 : vector<8x256xf32>
    %210 = arith.addf %207, %209 : vector<8x256xf32>
    %c5_i32_82 = arith.constant 5 : i32
    %cst_83 = arith.constant 5.4899807 : f32
    %211 = vector.broadcast %cst_83 : f32 to vector<8x256xf32>
    %212 = arith.mulf %210, %211 : vector<8x256xf32>
    %c0_84 = arith.constant 0 : index
    %c0_85 = arith.constant 0 : index
    %213 = vector.load %arg7[%c0_84, %c0_85] : memref<3x1xf32, #tpu.memory_space<vmem>>, vector<3x1xf32>
    %214 = vector.shape_cast %213 : vector<3x1xf32> to vector<3x1xf32>
    %215 = vector.broadcast %214 : vector<3x1xf32> to vector<3x256xf32>
    %c0_86 = arith.constant 0 : index
    %c0_87 = arith.constant 0 : index
    %216 = vector.load %arg6[%c0_86, %c0_87] : memref<3x72xf32, #tpu.memory_space<vmem>>, vector<3x72xf32>
    %c17_i32_88 = arith.constant 17 : i32
    %217 = tpu.dynamic_rotate %212 by %c17_i32_88 dim 1 : vector<8x256xf32>, i32 -> vector<8x256xf32>
    %c16_i32_89 = arith.constant 16 : i32
    %218 = tpu.dynamic_rotate %212 by %c16_i32_89 dim 1 : vector<8x256xf32>, i32 -> vector<8x256xf32>
    %c15_i32_90 = arith.constant 15 : i32
    %219 = tpu.dynamic_rotate %212 by %c15_i32_90 dim 1 : vector<8x256xf32>, i32 -> vector<8x256xf32>
    %c1_i32_91 = arith.constant 1 : i32
    %220 = tpu.dynamic_rotate %212 by %c1_i32_91 dim 1 : vector<8x256xf32>, i32 -> vector<8x256xf32>
    %c255_i32_92 = arith.constant 255 : i32
    %221 = tpu.dynamic_rotate %212 by %c255_i32_92 dim 1 : vector<8x256xf32>, i32 -> vector<8x256xf32>
    %c241_i32_93 = arith.constant 241 : i32
    %222 = tpu.dynamic_rotate %212 by %c241_i32_93 dim 1 : vector<8x256xf32>, i32 -> vector<8x256xf32>
    %c240_i32_94 = arith.constant 240 : i32
    %223 = tpu.dynamic_rotate %212 by %c240_i32_94 dim 1 : vector<8x256xf32>, i32 -> vector<8x256xf32>
    %c239_i32_95 = arith.constant 239 : i32
    %224 = tpu.dynamic_rotate %212 by %c239_i32_95 dim 1 : vector<8x256xf32>, i32 -> vector<8x256xf32>
    %225 = tpu.concatenate %217, %218, %219, %220, %212, %221, %222, %223, %224 in 0 : vector<8x256xf32>, vector<8x256xf32>, vector<8x256xf32>, vector<8x256xf32>, vector<8x256xf32>, vector<8x256xf32>, vector<8x256xf32>, vector<8x256xf32>, vector<8x256xf32> -> vector<72x256xf32>
    %c0_96 = arith.constant 0 : index
    %c0_97 = arith.constant 0 : index
    %226 = vector.load %arg3[%c0_96, %c0_97] : memref<72x256xf32, #tpu.memory_space<vmem>>, vector<72x256xf32>
    %227 = arith.mulf %225, %226 : vector<72x256xf32>
    %cst_98 = arith.constant dense<0.000000e+00> : vector<3x256xf32>
    %228 = tpu.matmul %216, %227, %cst_98 {dimension_numbers = #tpu.dot_dimension_numbers<[1], [0], [0], [1], [0, 0, 1, 1], [], []>} : vector<3x72xf32>, vector<72x256xf32>, vector<3x256xf32> -> vector<3x256xf32>
    %229 = arith.addf %228, %215 : vector<3x256xf32>
    %230 = math.tanh %229 : vector<3x256xf32>
    %cst_99 = arith.constant 1.000000e+00 : f32
    %231 = vector.broadcast %cst_99 : f32 to vector<3x256xf32>
    %232 = arith.addf %230, %231 : vector<3x256xf32>
    %cst_100 = arith.constant 5.000000e-01 : f32
    %233 = vector.broadcast %cst_100 : f32 to vector<3x256xf32>
    %234 = arith.mulf %232, %233 : vector<3x256xf32>
    %c0_101 = arith.constant 0 : index
    %c0_102 = arith.constant 0 : index
    %c0_103 = arith.constant 0 : index
    %235 = vector.load %arg8[%c0_101, %c0_102, %c0_103] : memref<1x3x256xf32, #tpu.memory_space<vmem>>, vector<1x3x256xf32>
    %236 = vector.shape_cast %235 : vector<1x3x256xf32> to vector<3x256xf32>
    %237 = vector.shape_cast %234 : vector<3x256xf32> to vector<1x3x256xf32>
    tpu.vector_store %arg8[%c0_101, %c0_102, %c0_103], %237 {strides = array<i32>} : memref<1x3x256xf32, #tpu.memory_space<vmem>>, vector<1x3x256xf32>,
    return
  }
  func.func @transform_0(%arg0: i32) -> i32 {
    %c0_i32 = arith.constant 0 : i32
    %c0_i32_0 = arith.constant 0 : i32
    return %c0_i32 : i32
  }
  func.func @transform_1(%arg0: i32) -> (i32, i32, i32) {
    %c0_i32 = arith.constant 0 : i32
    %c0_i32_0 = arith.constant 0 : i32
    %c0_i32_1 = arith.constant 0 : i32
    return %arg0, %c0_i32, %c0_i32_0 : i32, i32, i32
  }
  func.func @transform_2(%arg0: i32) -> (i32, i32) {
    %c0_i32 = arith.constant 0 : i32
    %c0_i32_0 = arith.constant 0 : i32
    %c0_i32_1 = arith.constant 0 : i32
    return %c0_i32, %c0_i32_0 : i32, i32
  }
  func.func @transform_3(%arg0: i32) -> (i32, i32) {
    %c0_i32 = arith.constant 0 : i32
    %c0_i32_0 = arith.constant 0 : i32
    %c0_i32_1 = arith.constant 0 : i32
    return %c0_i32, %c0_i32_0 : i32, i32
  }
  func.func @transform_4(%arg0: i32) -> (i32, i32) {
    %c0_i32 = arith.constant 0 : i32
    %c0_i32_0 = arith.constant 0 : i32
    %c0_i32_1 = arith.constant 0 : i32
    return %c0_i32, %c0_i32_0 : i32, i32
  }
  func.func @transform_5(%arg0: i32) -> (i32, i32) {
    %c0_i32 = arith.constant 0 : i32
    %c0_i32_0 = arith.constant 0 : i32
    %c0_i32_1 = arith.constant 0 : i32
    return %c0_i32, %c0_i32_0 : i32, i32
  }
  func.func @transform_6(%arg0: i32) -> (i32, i32) {
    %c0_i32 = arith.constant 0 : i32
    %c0_i32_0 = arith.constant 0 : i32
    %c0_i32_1 = arith.constant 0 : i32
    return %c0_i32, %c0_i32_0 : i32, i32
  }
  func.func @transform_7(%arg0: i32) -> (i32, i32, i32) {
    %c0_i32 = arith.constant 0 : i32
    %c0_i32_0 = arith.constant 0 : i32
    %c0_i32_1 = arith.constant 0 : i32
    return %arg0, %c0_i32, %c0_i32_0 : i32, i32, i32
  }
}

</mosaic_0001>

<llo_original>
// kernel: latentdiff_forward.1
$region0: #{latentdiff_forward.1}
  #allocation0 [shape = 'u32[]', space=smem, size = 0x4, offset = 0x4, fixed_abs, tag = 'smem constant byte address 0x4 - core index']
  #allocation1 [shape = 'u32[144,128]{1,0:T(1,128)}', space=vmem, size = 0x12000, scoped, tag = 'internal scratch']
  %s0 = inlined_call_operand.vmem [shape: f32[25], index: 0, kind: input, shape index: {}]
  %s1 = inlined_call_operand.vmem [shape: f32[2,8,256], index: 1, kind: input, shape index: {}]
  %s2 = inlined_call_operand.vmem [shape: f32[72,256], index: 2, kind: input, shape index: {}]
  %s3 = inlined_call_operand.vmem [shape: f32[8,72], index: 3, kind: input, shape index: {}]
  %s4 = inlined_call_operand.vmem [shape: f32[8,1], index: 4, kind: input, shape index: {}]
  %s5 = inlined_call_operand.vmem [shape: f32[3,72], index: 5, kind: input, shape index: {}]
  %s6 = inlined_call_operand.vmem [shape: f32[3,1], index: 6, kind: input, shape index: {}]
  %s7 = inlined_call_operand.vmem [shape: f32[2,3,256], index: 7, kind: output, shape index: {}]
  %s8 = sld [smem:[#allocation0]]
  $region65: #{latentdiff_forward.1} parent=0
    _
  %s10 = ssub.s32 1, %s8
  %s11 = scalar_select 0, %s10, %s8
  $region1: #{latentdiff_forward.1} parent=0
    #allocation2 [shape = 'u8[512]{0}', space=smem, size = 0x200, scoped, tag = 'input window, operand 0, single buffered']
    #allocation3 [shape = 's32[2]{0}', space=sflag, size = 0x8, scoped, tag = 'scoped memory for latentdiff_forward.1']
    %12 = vsyncpa [#allocation3], 0
    loop: start=0, step=1, limit=4
    $region2: #{latentdiff_forward.1} parent=1 // loop_pre_header
      _
    $region3: #{latentdiff_forward.1} parent=1 // loop_header
      %s14 = sphi 0, %s18
      %p15 = scmp.ge.s32.totalorder %s14, 4
      %s22 = sphi 0, %s22
      %s24 = sphi 0, %s22
      %s25 = sphi 0, %s24
      %s39 = sphi 0, %s25
      %s45 = sphi 0, %s47
      %s48 = sphi 0, %s45
      %s49 = sphi 0, %s48
      %s65 = sphi 0, %s49
      %s69 = sphi 0, %s69
      %s71 = sphi 0, %s69
      %s72 = sphi 0, %s71
      %s86 = sphi 0, %s72
      %s90 = sphi 0, %s90
      %s92 = sphi 0, %s90
      %s93 = sphi 0, %s92
      %s107 = sphi 0, %s93
      %s111 = sphi 0, %s111
      %s113 = sphi 0, %s111
      %s114 = sphi 0, %s113
      %s128 = sphi 0, %s114
      %s132 = sphi 0, %s132
      %s134 = sphi 0, %s132
      %s135 = sphi 0, %s134
      %s149 = sphi 0, %s135
      %s153 = sphi 0, %s153
      %s155 = sphi 0, %s153
      %s156 = sphi 0, %s155
      %s170 = sphi 0, %s156
      %s176 = sphi 0, %s178
      %s179 = sphi 0, %s176
      %s180 = sphi 0, %s179
      %s196 = sphi 0, %s180
    $region4: #{latentdiff_forward.1} parent=1 // loop_header_branch
      %17 = sbr.rel (%p15) target = $region8
    $region5: #{latentdiff_forward.1} parent=1 // loop_body
      %s19 = ssub.s32 %s14, 1
      %s20 = ssub.s32 %s14, 2
      %s21 = sadd.s32 %s14, 1
      %s23 = sadd.s32 %s22, 1
      %p26 = scmp.eq.s32.totalorder %s14, 1
      %p27 = scmp.ne.s32.totalorder %s22, %s24
      %p28 = scmp.eq.s32.totalorder %s14, 0
      %p29 = por %p27, %p28
      %p30 = scmp.ne.s32.totalorder %s22, %s24
      %p31 = scmp.eq.s32.totalorder %s19, 1
      %p32 = por %p30, %p31
      %p33 = scmp.ne.s32.totalorder %s24, %s25
      %p34 = scmp.eq.s32.totalorder %s19, 0
      %p35 = por %p33, %p34
      %p36 = scmp.ne.s32.totalorder %s24, %s25
      %p37 = scmp.eq.s32.totalorder %s20, 1
      %p38 = por %p36, %p37
      %p40 = scmp.ne.s32.totalorder %s25, %s39
      %p41 = scmp.eq.s32.totalorder %s20, 0
      %p42 = por %p40, %p41
      %s43 = ssub.s32 %s14, %s21
      %p44 = scmp.eq.s32.totalorder %s43, 0
      %s46 = sadd.s32 %s45, 1
      %s47 = scalar_select %p44, %s45, %s46
      %p50 = pneg %p44
      %p51 = scmp.eq.s32.totalorder %s14, 1
      %p52 = por %p50, %p51
      %p53 = scmp.ne.s32.totalorder %s45, %s48
      %p54 = scmp.eq.s32.totalorder %s14, 0
      %p55 = por %p53, %p54
      %p56 = scmp.ne.s32.totalorder %s45, %s48
      %p57 = scmp.eq.s32.totalorder %s19, 1
      %p58 = por %p56, %p57
      %p59 = scmp.ne.s32.totalorder %s48, %s49
      %p60 = scmp.eq.s32.totalorder %s19, 0
      %p61 = por %p59, %p60
      %p62 = scmp.ne.s32.totalorder %s48, %s49
      %p63 = scmp.eq.s32.totalorder %s20, 1
      %p64 = por %p62, %p63
      %p66 = scmp.ne.s32.totalorder %s49, %s65
      %p67 = scmp.eq.s32.totalorder %s20, 0
      %p68 = por %p66, %p67
      %s70 = sadd.s32 %s69, 1
      %p73 = scmp.eq.s32.totalorder %s14, 1
      %p74 = scmp.ne.s32.totalorder %s69, %s71
      %p75 = scmp.eq.s32.totalorder %s14, 0
      %p76 = por %p74, %p75
      %p77 = scmp.ne.s32.totalorder %s69, %s71
      %p78 = scmp.eq.s32.totalorder %s19, 1
      %p79 = por %p77, %p78
      %p80 = scmp.ne.s32.totalorder %s71, %s72
      %p81 = scmp.eq.s32.totalorder %s19, 0
      %p82 = por %p80, %p81
      %p83 = scmp.ne.s32.totalorder %s71, %s72
      %p84 = scmp.eq.s32.totalorder %s20, 1
      %p85 = por %p83, %p84
      %p87 = scmp.ne.s32.totalorder %s72, %s86
      %p88 = scmp.eq.s32.totalorder %s20, 0
      %p89 = por %p87, %p88
      %s91 = sadd.s32 %s90, 1
      %p94 = scmp.eq.s32.totalorder %s14, 1
      %p95 = scmp.ne.s32.totalorder %s90, %s92
      %p96 = scmp.eq.s32.totalorder %s14, 0
      %p97 = por %p95, %p96
      %p98 = scmp.ne.s32.totalorder %s90, %s92
      %p99 = scmp.eq.s32.totalorder %s19, 1
      %p100 = por %p98, %p99
      %p101 = scmp.ne.s32.totalorder %s92, %s93
      %p102 = scmp.eq.s32.totalorder %s19, 0
      %p103 = por %p101, %p102
      %p104 = scmp.ne.s32.totalorder %s92, %s93
      %p105 = scmp.eq.s32.totalorder %s20, 1
      %p106 = por %p104, %p105
      %p108 = scmp.ne.s32.totalorder %s93, %s107
      %p109 = scmp.eq.s32.totalorder %s20, 0
      %p110 = por %p108, %p109
      %s112 = sadd.s32 %s111, 1
      %p115 = scmp.eq.s32.totalorder %s14, 1
      %p116 = scmp.ne.s32.totalorder %s111, %s113
      %p117 = scmp.eq.s32.totalorder %s14, 0
      %p118 = por %p116, %p117
      %p119 = scmp.ne.s32.totalorder %s111, %s113
      %p120 = scmp.eq.s32.totalorder %s19, 1
      %p121 = por %p119, %p120
      %p122 = scmp.ne.s32.totalorder %s113, %s114
      %p123 = scmp.eq.s32.totalorder %s19, 0
      %p124 = por %p122, %p123
      %p125 = scmp.ne.s32.totalorder %s113, %s114
      %p126 = scmp.eq.s32.totalorder %s20, 1
      %p127 = por %p125, %p126
      %p129 = scmp.ne.s32.totalorder %s114, %s128
      %p130 = scmp.eq.s32.totalorder %s20, 0
      %p131 = por %p129, %p130
      %s133 = sadd.s32 %s132, 1
      %p136 = scmp.eq.s32.totalorder %s14, 1
      %p137 = scmp.ne.s32.totalorder %s132, %s134
      %p138 = scmp.eq.s32.totalorder %s14, 0
      %p139 = por %p137, %p138
      %p140 = scmp.ne.s32.totalorder %s132, %s134
      %p141 = scmp.eq.s32.totalorder %s19, 1
      %p142 = por %p140, %p141
      %p143 = scmp.ne.s32.totalorder %s134, %s135
      %p144 = scmp.eq.s32.totalorder %s19, 0
      %p145 = por %p143, %p144
      %p146 = scmp.ne.s32.totalorder %s134, %s135
      %p147 = scmp.eq.s32.totalorder %s20, 1
      %p148 = por %p146, %p147
      %p150 = scmp.ne.s32.totalorder %s135, %s149
      %p151 = scmp.eq.s32.totalorder %s20, 0
      %p152 = por %p150, %p151
      %s154 = sadd.s32 %s153, 1
      %p157 = scmp.eq.s32.totalorder %s14, 1
      %p158 = scmp.ne.s32.totalorder %s153, %s155
      %p159 = scmp.eq.s32.totalorder %s14, 0
      %p160 = por %p158, %p159
      %p161 = scmp.ne.s32.totalorder %s153, %s155
      %p162 = scmp.eq.s32.totalorder %s19, 1
      %p163 = por %p161, %p162
      %p164 = scmp.ne.s32.totalorder %s155, %s156
      %p165 = scmp.eq.s32.totalorder %s19, 0
      %p166 = por %p164, %p165
      %p167 = scmp.ne.s32.totalorder %s155, %s156
      %p168 = scmp.eq.s32.totalorder %s20, 1
      %p169 = por %p167, %p168
      %p171 = scmp.ne.s32.totalorder %s156, %s170
      %p172 = scmp.eq.s32.totalorder %s20, 0
      %p173 = por %p171, %p172
      %s174 = ssub.s32 %s14, %s21
      %p175 = scmp.eq.s32.totalorder %s174, 0
      %s177 = sadd.s32 %s176, 1
      %s178 = scalar_select %p175, %s176, %s177
      %p181 = pneg %p175
      %p182 = scmp.eq.s32.totalorder %s14, 1
      %p183 = por %p181, %p182
      %p184 = scmp.ne.s32.totalorder %s176, %s179
      %p185 = scmp.eq.s32.totalorder %s14, 0
      %p186 = por %p184, %p185
      %p187 = scmp.ne.s32.totalorder %s176, %s179
      %p188 = scmp.eq.s32.totalorder %s19, 1
      %p189 = por %p187, %p188
      %p190 = scmp.ne.s32.totalorder %s179, %s180
      %p191 = scmp.eq.s32.totalorder %s19, 0
      %p192 = por %p190, %p191
      %p193 = scmp.ne.s32.totalorder %s179, %s180
      %p194 = scmp.eq.s32.totalorder %s20, 1
      %p195 = por %p193, %p194
      %p197 = scmp.ne.s32.totalorder %s180, %s196
      %p198 = scmp.eq.s32.totalorder %s20, 0
      %p199 = por %p197, %p198
      %p200 = scmp.le.s32.totalorder 1, %s14
      %p201 = scmp.lt.s32.totalorder %s14, 3
      %p202 = pnand %p200, %p201
      %p203 = pneg %p202
      // Predicated region
      $region9: #{latentdiff_forward.1} parent=5 // pred_check
        _
      $region10: #{latentdiff_forward.1} parent=5 // pred_check_branch
        %205 = sbr.rel (%p202) target = $region12
      $region11: #{latentdiff_forward.1} parent=5 // pred_region
        %s206 = ssub.s32 %s14, 1
        // Predicated region
        $region13: #{latentdiff_forward.1} parent=11 // pred_check
          %p207 = pneg %p35
        $region14: #{latentdiff_forward.1} parent=11 // pred_check_branch
          %209 = sbr.rel (%p207) target = $region16
        $region15: #{latentdiff_forward.1} parent=11 // pred_region
          %s211 = ssub.s32 16, 16
          %212 = vsyncadd [#allocation3], %s211
          %s214 = sshll.u32 %s0, 4
          %s215 = int_to_ptr.vmem [resolvable:$true] %s214
          %217 = dma.vmem_to_smem %s215, 16, [#allocation2], [#allocation3]
        $region16: #{latentdiff_forward.1} parent=11 // pred_fallthru
          _
        // Predicated region
        $region17: #{latentdiff_forward.1} parent=11 // pred_check
          %p218 = pneg %p82
        $region18: #{latentdiff_forward.1} parent=11 // pred_check_branch
          %220 = sbr.rel (%p218) target = $region20
        $region19: #{latentdiff_forward.1} parent=11 // pred_region
          _
        $region20: #{latentdiff_forward.1} parent=11 // pred_fallthru
          _
        // Predicated region
        $region21: #{latentdiff_forward.1} parent=11 // pred_check
          %p221 = pneg %p103
        $region22: #{latentdiff_forward.1} parent=11 // pred_check_branch
          %223 = sbr.rel (%p221) target = $region24
        $region23: #{latentdiff_forward.1} parent=11 // pred_region
          _
        $region24: #{latentdiff_forward.1} parent=11 // pred_fallthru
          _
        // Predicated region
        $region25: #{latentdiff_forward.1} parent=11 // pred_check
          %p224 = pneg %p124
        $region26: #{latentdiff_forward.1} parent=11 // pred_check_branch
          %226 = sbr.rel (%p224) target = $region28
        $region27: #{latentdiff_forward.1} parent=11 // pred_region
          _
        $region28: #{latentdiff_forward.1} parent=11 // pred_fallthru
          _
        // Predicated region
        $region29: #{latentdiff_forward.1} parent=11 // pred_check
          %p227 = pneg %p145
        $region30: #{latentdiff_forward.1} parent=11 // pred_check_branch
          %229 = sbr.rel (%p227) target = $region32
        $region31: #{latentdiff_forward.1} parent=11 // pred_region
          _
        $region32: #{latentdiff_forward.1} parent=11 // pred_fallthru
          _
        // Predicated region
        $region33: #{latentdiff_forward.1} parent=11 // pred_check
          %p230 = pneg %p166
        $region34: #{latentdiff_forward.1} parent=11 // pred_check_branch
          %232 = sbr.rel (%p230) target = $region36
        $region35: #{latentdiff_forward.1} parent=11 // pred_region
          _
        $region36: #{latentdiff_forward.1} parent=11 // pred_fallthru
          _
      $region12: #{latentdiff_forward.1} parent=5 // pred_fallthru
        _
      %p233 = scmp.lt.s32.totalorder %s14, 2
      // Predicated region
      $region37: #{latentdiff_forward.1} parent=5 // pred_check
        %p234 = pneg %p233
      $region38: #{latentdiff_forward.1} parent=5 // pred_check_branch
        %236 = sbr.rel (%p234) target = $region40
      $region39: #{latentdiff_forward.1} parent=5 // pred_region
        // Predicated region
        $region41: #{latentdiff_forward.1} parent=39 // pred_check
          %p237 = pneg %p55
        $region42: #{latentdiff_forward.1} parent=39 // pred_check_branch
          %239 = sbr.rel (%p237) target = $region44
        $region43: #{latentdiff_forward.1} parent=39 // pred_region
          %p240 = scmp.lt.s32.totalorder %s14, 1
          %s241 = scalar_select %p240, %s14, 1
          %s242 = smul.addr %s241, 2
          %s243 = smul.addr %s242, 8
          %s244 = scalar_lea.vmem %s1, %s243
        $region44: #{latentdiff_forward.1} parent=39 // pred_fallthru
          _
      $region40: #{latentdiff_forward.1} parent=5 // pred_fallthru
        _
      %p245 = scmp.le.s32.totalorder 1, %s14
      %p246 = scmp.lt.s32.totalorder %s14, 3
      %p247 = pnand %p245, %p246
      %p248 = pneg %p247
      // Predicated region
      $region45: #{latentdiff_forward.1} parent=5 // pred_check
        _
      $region46: #{latentdiff_forward.1} parent=5 // pred_check_branch
        %250 = sbr.rel (%p247) target = $region48
      $region47: #{latentdiff_forward.1} parent=5 // pred_region
        %s251 = ssub.s32 %s14, 1
        // Predicated region
        $region49: #{latentdiff_forward.1} parent=47 // pred_check
          %p252 = pneg %p35
        $region50: #{latentdiff_forward.1} parent=47 // pred_check_branch
          %254 = sbr.rel (%p252) target = $region52
        $region51: #{latentdiff_forward.1} parent=47 // pred_region
          %255 = dma.done [#allocation3], 16
        $region52: #{latentdiff_forward.1} parent=47 // pred_fallthru
          _
        %256 = sfence
        %p257 = pneg %p35
        %p258 = pneg %p32
        %p259 = scmp.lt.s32.totalorder %s19, 1
        %s260 = scalar_select %p259, %s19, 1
        %s261 = smul.addr %s260, 2
        %s262 = smul.addr %s261, 8
        %s263 = scalar_lea.vmem %s1, %s262
        %p264 = pneg %p61
        %p265 = pneg %p58
        %p266 = pneg %p82
        %p267 = pneg %p79
        %p268 = pneg %p103
        %p269 = pneg %p100
        %p270 = pneg %p124
        %p271 = pneg %p121
        %p272 = pneg %p145
        %p273 = pneg %p142
        %p274 = pneg %p166
        %p275 = pneg %p163
        %p276 = pneg %p192
        %p277 = pneg %p189
        %p278 = scmp.lt.s32.totalorder %s19, 1
        %s279 = scalar_select %p278, %s19, 1
        %s280 = smul.addr %s279, 2
        %s281 = smul.addr %s280, 4
        %s282 = scalar_lea.vmem %s7, %s281
        %p283 = scmp.lt.s32.totalorder %s19, 1
        %s284 = scalar_select %p283, %s19, 1
        %s285 = smul.addr %s284, 2
        %s286 = smul.addr %s285, 8
        %s287 = scalar_lea.vmem %s1, %s286
        %p288 = scmp.lt.s32.totalorder %s19, 1
        %s289 = scalar_select %p288, %s19, 1
        %s290 = smul.addr %s289, 2
        %s291 = smul.addr %s290, 4
        %s292 = scalar_lea.vmem %s7, %s291
        %v293 = vld [vmem:[%s3] sm:$0xff]
        %v294 = vld [vmem:[%s4] sm:$0xff]
        %296 = vset.pattern.permute.xlu0 0
        %297 = vperm.xlu0 %296, %v294
        %v298 = vpop.permute.xlu0 %297
        %v300 = vld [vmem:[%s287] sm:$0xff]
        %v301 = vld [vmem:[%s287 + $0x8] sm:$0xff]
        %s302 = sld [smem:[#allocation2]]
        %s303 = sld [smem:[#allocation2 + $0x1]]
        %s304 = sld [smem:[#allocation2 + $0x2]]
        %s305 = sld [smem:[#allocation2 + $0x3]]
        %s306 = sld [smem:[#allocation2 + $0x4]]
        %307 = vrot.lane.b32.xlu0 %v300, 17
        %v308 = vpop.permute.xlu0 %307
        %309 = vrot.lane.b32.xlu0 %v301, 17
        %v310 = vpop.permute.xlu0 %309
        %v311 = vlaneseq
        %v312 = vand.u32 %v311, 127
        %vm313 = vcmp.lt.s32.totalorder %v312, 17
        %v314 = vsel %vm313, %v308, %v310
        %v315 = vsel %vm313, %v310, %v308
        %316 = vrot.lane.b32.xlu0 %v300, 16
        %v317 = vpop.permute.xlu0 %316
        %318 = vrot.lane.b32.xlu0 %v301, 16
        %v319 = vpop.permute.xlu0 %318
        %vm320 = vcmp.lt.s32.totalorder %v312, 16
        %v321 = vsel %vm320, %v317, %v319
        %v322 = vsel %vm320, %v319, %v317
        %323 = vrot.lane.b32.xlu0 %v300, 15
        %v324 = vpop.permute.xlu0 %323
        %325 = vrot.lane.b32.xlu0 %v301, 15
        %v326 = vpop.permute.xlu0 %325
        %vm327 = vcmp.lt.s32.totalorder %v312, 15
        %v328 = vsel %vm327, %v324, %v326
        %v329 = vsel %vm327, %v326, %v324
        %330 = vrot.lane.b32.xlu0 %v300, 1
        %v331 = vpop.permute.xlu0 %330
        %332 = vrot.lane.b32.xlu0 %v301, 1
        %v333 = vpop.permute.xlu0 %332
        %vm334 = vcmp.lt.s32.totalorder %v312, 1
        %v335 = vsel %vm334, %v331, %v333
        %v336 = vsel %vm334, %v333, %v331
        %337 = vrot.lane.b32.xlu0 %v300, 127
        %v338 = vpop.permute.xlu0 %337
        %339 = vrot.lane.b32.xlu0 %v301, 127
        %v340 = vpop.permute.xlu0 %339
        %vm341 = vcmp.lt.s32.totalorder %v312, 127
        %v342 = vsel %vm341, %v338, %v340
        %v343 = vsel %vm341, %v340, %v338
        %344 = vrot.lane.b32.xlu0 %v300, 113
        %v345 = vpop.permute.xlu0 %344
        %346 = vrot.lane.b32.xlu0 %v301, 113
        %v347 = vpop.permute.xlu0 %346
        %vm348 = vcmp.lt.s32.totalorder %v312, 113
        %v349 = vsel %vm348, %v345, %v347
        %v350 = vsel %vm348, %v347, %v345
        %351 = vrot.lane.b32.xlu0 %v300, 112
        %v352 = vpop.permute.xlu0 %351
        %353 = vrot.lane.b32.xlu0 %v301, 112
        %v354 = vpop.permute.xlu0 %353
        %vm355 = vcmp.lt.s32.totalorder %v312, 112
        %v356 = vsel %vm355, %v352, %v354
        %v357 = vsel %vm355, %v354, %v352
        %358 = vrot.lane.b32.xlu0 %v300, 111
        %v359 = vpop.permute.xlu0 %358
        %360 = vrot.lane.b32.xlu0 %v301, 111
        %v361 = vpop.permute.xlu0 %360
        %vm362 = vcmp.lt.s32.totalorder %v312, 111
        %v363 = vsel %vm362, %v359, %v361
        %v364 = vsel %vm362, %v361, %v359
        %v365 = vld [vmem:[%s2] sm:$0xff]
        %v366 = vld [vmem:[%s2 + $0x8] sm:$0xff]
        %v367 = vld [vmem:[%s2 + $0x10] sm:$0xff]
        %v368 = vld [vmem:[%s2 + $0x18] sm:$0xff]
        %v369 = vld [vmem:[%s2 + $0x20] sm:$0xff]
        %v370 = vld [vmem:[%s2 + $0x28] sm:$0xff]
        %v371 = vld [vmem:[%s2 + $0x30] sm:$0xff]
        %v372 = vld [vmem:[%s2 + $0x38] sm:$0xff]
        %v373 = vld [vmem:[%s2 + $0x40] sm:$0xff]
        %v374 = vld [vmem:[%s2 + $0x48] sm:$0xff]
        %v375 = vld [vmem:[%s2 + $0x50] sm:$0xff]
        %v376 = vld [vmem:[%s2 + $0x58] sm:$0xff]
        %v377 = vld [vmem:[%s2 + $0x60] sm:$0xff]
        %v378 = vld [vmem:[%s2 + $0x68] sm:$0xff]
        %v379 = vld [vmem:[%s2 + $0x70] sm:$0xff]
        %v380 = vld [vmem:[%s2 + $0x78] sm:$0xff]
        %v381 = vld [vmem:[%s2 + $0x80] sm:$0xff]
        %v382 = vld [vmem:[%s2 + $0x88] sm:$0xff]
        %v383 = vmul.f32 %v315, %v365
        %v384 = vmul.f32 %v314, %v366
        %v385 = vmul.f32 %v322, %v367
        %v386 = vmul.f32 %v321, %v368
        %v387 = vmul.f32 %v329, %v369
        %v388 = vmul.f32 %v328, %v370
        %v389 = vmul.f32 %v336, %v371
        %v390 = vmul.f32 %v335, %v372
        %v391 = vmul.f32 %v300, %v373
        %v392 = vmul.f32 %v301, %v374
        %v393 = vmul.f32 %v342, %v375
        %v394 = vmul.f32 %v343, %v376
        %v395 = vmul.f32 %v349, %v377
        %v396 = vmul.f32 %v350, %v378
        %v397 = vmul.f32 %v356, %v379
        %v398 = vmul.f32 %v357, %v380
        %v399 = vmul.f32 %v363, %v381
        %v400 = vmul.f32 %v364, %v382
        %vm401 = vcmask 588800
        %v403 = vsel %vm401, %v293, 0
        %405 = vmatprep.subr.mxu0 %v384
        %406 = vmatpush1.msra.mxu0 %v383
        %407 = vmatprep.subr.mxu0 %v386
        %408 = vmatpush1.msra.mxu0 %v385
        %409 = vmatprep.subr.mxu0 %v388
        %410 = vmatpush1.msra.mxu0 %v387
        %411 = vmatprep.subr.mxu0 %v390
        %412 = vmatpush1.msra.mxu0 %v389
        %413 = vmatprep.subr.mxu0 %v392
        %414 = vmatpush1.msra.mxu0 %v391
        %415 = vmatprep.subr.mxu0 %v394
        %416 = vmatpush1.msra.mxu0 %v393
        %417 = vmatprep.subr.mxu0 %v396
        %418 = vmatpush1.msra.mxu0 %v395
        %419 = vmatprep.subr.mxu0 %v398
        %420 = vmatpush1.msra.mxu0 %v397
        %421 = vmatprep.subr.mxu0 %v400
        %422 = vmatpush1.msra.mxu0 %v399
        %423 = vmatprep.subr.mxu0 0.0
        %424 = vmatpush1.msra.mxu0 0.0
        %425 = vmatprep.subr.mxu0 0.0
        %426 = vmatpush1.msra.mxu0 0.0
        %427 = vmatprep.subr.mxu0 0.0
        %428 = vmatpush1.msra.mxu0 0.0
        %429 = vmatprep.subr.mxu0 0.0
        %430 = vmatpush1.msra.mxu0 0.0
        %431 = vmatprep.subr.mxu0 0.0
        %432 = vmatpush1.msra.mxu0 0.0
        %433 = vmatprep.subr.mxu0 0.0
        %434 = vmatpush1.msra.mxu0 0.0
        %435 = vmatprep.subr.mxu0 0.0
        %436 = vmatpush1.msra.mxu0 0.0
        %437 = vmatprep.subr.mxu0 0.0
        %438 = vmatpush1.msra.mxu0 0.0
        %439 = vmatprep.subr.mxu0 0.0
        %440 = vmatpush1.msra.mxu0 0.0
        %441 = vmatprep.subr.mxu0 0.0
        %442 = vmatpush1.msra.mxu0 0.0
        %443 = vmatprep.subr.mxu0 0.0
        %444 = vmatpush1.msra.mxu0 0.0
        %445 = vmatprep.subr.mxu0 0.0
        %446 = vmatpush1.msra.mxu0 0.0
        %447 = vmatprep.subr.mxu0 0.0
        %448 = vmatpush1.msra.mxu0 0.0
        %449 = vmatprep.subr.mxu0 0.0
        %450 = vmatpush1.msra.mxu0 0.0
        %451 = vmatprep.subr.mxu0 0.0
        %452 = vmatpush1.msra.mxu0 0.0
        %453 = vmatprep.subr.mxu0 0.0
        %454 = vmatpush1.msra.mxu0 0.0
        %455 = vmatprep.subr.mxu0 0.0
        %456 = vmatpush1.msra.mxu0 0.0
        %457 = vmatprep.subr.mxu0 0.0
        %458 = vmatpush1.msra.mxu0 0.0
        %459 = vmatprep.subr.mxu0 0.0
        %460 = vmatpush1.msra.mxu0 0.0
        %461 = vmatprep.subr.mxu0 0.0
        %462 = vmatpush1.msra.mxu0 0.0
        %463 = vmatprep.subr.mxu0 0.0
        %464 = vmatpush1.msra.mxu0 0.0
        %465 = vmatprep.subr.mxu0 0.0
        %466 = vmatpush1.msra.mxu0 0.0
        %467 = vmatprep.subr.mxu0 0.0
        %468 = vmatpush1.msra.mxu0 0.0
        %469 = vmatprep.mubr.f32.mxu0 0.0
        %470 = vmatmul.mubr.f32.gmra.mrb[0].mxu0 %v403
        %v471 = vpop.f32.mrb[0].mxu0
        %v472 = vadd.f32 %v298, %v471
        %v473 = vpop.f32.mrb[0].mxu0
        %v474 = vadd.f32 %v298, %v473
        %475 = vdwg.mxu0
        %v476 = vstv %s302
        %v477 = vadd.f32 %v472, %v476
        %v478 = vadd.f32 %v474, %v476
        %v479 = vstv %s304
        %v480 = vmul.f32 %v479, %v477
        %v481 = vmul.f32 %v479, %v478
        %v482 = vsub.f32 %v300, %v480
        %v483 = vsub.f32 %v301, %v481
        %v484 = vstv %s303
        %v485 = vmul.f32 %v482, %v484
        %v486 = vmul.f32 %v483, %v484
        %v487 = vstv %s305
        %v488 = vmul.f32 %v487, %v485
        %v489 = vmul.f32 %v487, %v486
        %v490 = vstv %s306
        %v491 = vmul.f32 %v490, %v477
        %v492 = vmul.f32 %v490, %v478
        %v493 = vadd.f32 %v488, %v491
        %v494 = vadd.f32 %v489, %v492
        %s495 = sld [smem:[#allocation2 + $0x5]]
        %s496 = sld [smem:[#allocation2 + $0x6]]
        %s497 = sld [smem:[#allocation2 + $0x7]]
        %s498 = sld [smem:[#allocation2 + $0x8]]
        %s499 = sld [smem:[#allocation2 + $0x9]]
        %500 = vrot.lane.b32.xlu0 %v493, 17
        %v501 = vpop.permute.xlu0 %500
        %502 = vrot.lane.b32.xlu0 %v494, 17
        %v503 = vpop.permute.xlu0 %502
        %v504 = vsel %vm313, %v501, %v503
        %v505 = vsel %vm313, %v503, %v501
        %506 = vrot.lane.b32.xlu0 %v493, 16
        %v507 = vpop.permute.xlu0 %506
        %508 = vrot.lane.b32.xlu0 %v494, 16
        %v509 = vpop.permute.xlu0 %508
        %v510 = vsel %vm320, %v507, %v509
        %v511 = vsel %vm320, %v509, %v507
        %512 = vrot.lane.b32.xlu0 %v493, 15
        %v513 = vpop.permute.xlu0 %512
        %514 = vrot.lane.b32.xlu0 %v494, 15
        %v515 = vpop.permute.xlu0 %514
        %v516 = vsel %vm327, %v513, %v515
        %v517 = vsel %vm327, %v515, %v513
        %518 = vrot.lane.b32.xlu0 %v493, 1
        %v519 = vpop.permute.xlu0 %518
        %520 = vrot.lane.b32.xlu0 %v494, 1
        %v521 = vpop.permute.xlu0 %520
        %v522 = vsel %vm334, %v519, %v521
        %v523 = vsel %vm334, %v521, %v519
        %524 = vrot.lane.b32.xlu0 %v493, 127
        %v525 = vpop.permute.xlu0 %524
        %526 = vrot.lane.b32.xlu0 %v494, 127
        %v527 = vpop.permute.xlu0 %526
        %v528 = vsel %vm341, %v525, %v527
        %v529 = vsel %vm341, %v527, %v525
        %530 = vrot.lane.b32.xlu0 %v493, 113
        %v531 = vpop.permute.xlu0 %530
        %532 = vrot.lane.b32.xlu0 %v494, 113
        %v533 = vpop.permute.xlu0 %532
        %v534 = vsel %vm348, %v531, %v533
        %v535 = vsel %vm348, %v533, %v531
        %536 = vrot.lane.b32.xlu0 %v493, 112
        %v537 = vpop.permute.xlu0 %536
        %538 = vrot.lane.b32.xlu0 %v494, 112
        %v539 = vpop.permute.xlu0 %538
        %v540 = vsel %vm355, %v537, %v539
        %v541 = vsel %vm355, %v539, %v537
        %542 = vrot.lane.b32.xlu0 %v493, 111
        %v543 = vpop.permute.xlu0 %542
        %544 = vrot.lane.b32.xlu0 %v494, 111
        %v545 = vpop.permute.xlu0 %544
        %v546 = vsel %vm362, %v543, %v545
        %v547 = vsel %vm362, %v545, %v543
        %v548 = vmul.f32 %v505, %v365
        %v549 = vmul.f32 %v504, %v366
        %v550 = vmul.f32 %v511, %v367
        %v551 = vmul.f32 %v510, %v368
        %v552 = vmul.f32 %v517, %v369
        %v553 = vmul.f32 %v516, %v370
        %v554 = vmul.f32 %v523, %v371
        %v555 = vmul.f32 %v522, %v372
        %v556 = vmul.f32 %v493, %v373
        %v557 = vmul.f32 %v494, %v374
        %v558 = vmul.f32 %v528, %v375
        %v559 = vmul.f32 %v529, %v376
        %v560 = vmul.f32 %v534, %v377
        %v561 = vmul.f32 %v535, %v378
        %v562 = vmul.f32 %v540, %v379
        %v563 = vmul.f32 %v541, %v380
        %v564 = vmul.f32 %v546, %v381
        %v565 = vmul.f32 %v547, %v382
        %566 = vmatprep.subr.mxu0 %v549
        %567 = vmatpush1.msra.mxu0 %v548
        %568 = vmatprep.subr.mxu0 %v551
        %569 = vmatpush1.msra.mxu0 %v550
        %570 = vmatprep.subr.mxu0 %v553
        %571 = vmatpush1.msra.mxu0 %v552
        %572 = vmatprep.subr.mxu0 %v555
        %573 = vmatpush1.msra.mxu0 %v554
        %574 = vmatprep.subr.mxu0 %v557
        %575 = vmatpush1.msra.mxu0 %v556
        %576 = vmatprep.subr.mxu0 %v559
        %577 = vmatpush1.msra.mxu0 %v558
        %578 = vmatprep.subr.mxu0 %v561
        %579 = vmatpush1.msra.mxu0 %v560
        %580 = vmatprep.subr.mxu0 %v563
        %581 = vmatpush1.msra.mxu0 %v562
        %582 = vmatprep.subr.mxu0 %v565
        %583 = vmatpush1.msra.mxu0 %v564
        %584 = vmatprep.subr.mxu0 0.0
        %585 = vmatpush1.msra.mxu0 0.0
        %586 = vmatprep.subr.mxu0 0.0
        %587 = vmatpush1.msra.mxu0 0.0
        %588 = vmatprep.subr.mxu0 0.0
        %589 = vmatpush1.msra.mxu0 0.0
        %590 = vmatprep.subr.mxu0 0.0
        %591 = vmatpush1.msra.mxu0 0.0
        %592 = vmatprep.subr.mxu0 0.0
        %593 = vmatpush1.msra.mxu0 0.0
        %594 = vmatprep.subr.mxu0 0.0
        %595 = vmatpush1.msra.mxu0 0.0
        %596 = vmatprep.subr.mxu0 0.0
        %597 = vmatpush1.msra.mxu0 0.0
        %598 = vmatprep.subr.mxu0 0.0
        %599 = vmatpush1.msra.mxu0 0.0
        %600 = vmatprep.subr.mxu0 0.0
        %601 = vmatpush1.msra.mxu0 0.0
        %602 = vmatprep.subr.mxu0 0.0
        %603 = vmatpush1.msra.mxu0 0.0
        %604 = vmatprep.subr.mxu0 0.0
        %605 = vmatpush1.msra.mxu0 0.0
        %606 = vmatprep.subr.mxu0 0.0
        %607 = vmatpush1.msra.mxu0 0.0
        %608 = vmatprep.subr.mxu0 0.0
        %609 = vmatpush1.msra.mxu0 0.0
        %610 = vmatprep.subr.mxu0 0.0
        %611 = vmatpush1.msra.mxu0 0.0
        %612 = vmatprep.subr.mxu0 0.0
        %613 = vmatpush1.msra.mxu0 0.0
        %614 = vmatprep.subr.mxu0 0.0
        %615 = vmatpush1.msra.mxu0 0.0
        %616 = vmatprep.subr.mxu0 0.0
        %617 = vmatpush1.msra.mxu0 0.0
        %618 = vmatprep.subr.mxu0 0.0
        %619 = vmatpush1.msra.mxu0 0.0
        %620 = vmatprep.subr.mxu0 0.0
        %621 = vmatpush1.msra.mxu0 0.0
        %622 = vmatprep.subr.mxu0 0.0
        %623 = vmatpush1.msra.mxu0 0.0
        %624 = vmatprep.subr.mxu0 0.0
        %625 = vmatpush1.msra.mxu0 0.0
        %626 = vmatprep.subr.mxu0 0.0
        %627 = vmatpush1.msra.mxu0 0.0
        %628 = vmatprep.subr.mxu0 0.0
        %629 = vmatpush1.msra.mxu0 0.0
        %630 = vmatprep.mubr.f32.mxu0 0.0
        %631 = vmatmul.mubr.f32.gmra.mrb[0].mxu0 %v403
        %v632 = vpop.f32.mrb[0].mxu0
        %v633 = vadd.f32 %v298, %v632
        %v634 = vpop.f32.mrb[0].mxu0
        %v635 = vadd.f32 %v298, %v634
        %636 = vdwg.mxu0
        %v637 = vstv %s495
        %v638 = vadd.f32 %v633, %v637
        %v639 = vadd.f32 %v635, %v637
        %v640 = vstv %s497
        %v641 = vmul.f32 %v640, %v638
        %v642 = vmul.f32 %v640, %v639
        %v643 = vsub.f32 %v493, %v641
        %v644 = vsub.f32 %v494, %v642
        %v645 = vstv %s496
        %v646 = vmul.f32 %v643, %v645
        %v647 = vmul.f32 %v644, %v645
        %v648 = vstv %s498
        %v649 = vmul.f32 %v648, %v646
        %v650 = vmul.f32 %v648, %v647
        %v651 = vstv %s499
        %v652 = vmul.f32 %v651, %v638
        %v653 = vmul.f32 %v651, %v639
        %v654 = vadd.f32 %v649, %v652
        %v655 = vadd.f32 %v650, %v653
        %s656 = sld [smem:[#allocation2 + $0xa]]
        %s657 = sld [smem:[#allocation2 + $0xb]]
        %s658 = sld [smem:[#allocation2 + $0xc]]
        %s659 = sld [smem:[#allocation2 + $0xd]]
        %s660 = sld [smem:[#allocation2 + $0xe]]
        %661 = vrot.lane.b32.xlu0 %v654, 17
        %v662 = vpop.permute.xlu0 %661
        %663 = vrot.lane.b32.xlu0 %v655, 17
        %v664 = vpop.permute.xlu0 %663
        %v665 = vsel %vm313, %v662, %v664
        %v666 = vsel %vm313, %v664, %v662
        %667 = vrot.lane.b32.xlu0 %v654, 16
        %v668 = vpop.permute.xlu0 %667
        %669 = vrot.lane.b32.xlu0 %v655, 16
        %v670 = vpop.permute.xlu0 %669
        %v671 = vsel %vm320, %v668, %v670
        %v672 = vsel %vm320, %v670, %v668
        %673 = vrot.lane.b32.xlu0 %v654, 15
        %v674 = vpop.permute.xlu0 %673
        %675 = vrot.lane.b32.xlu0 %v655, 15
        %v676 = vpop.permute.xlu0 %675
        %v677 = vsel %vm327, %v674, %v676
        %v678 = vsel %vm327, %v676, %v674
        %679 = vrot.lane.b32.xlu0 %v654, 1
        %v680 = vpop.permute.xlu0 %679
        %681 = vrot.lane.b32.xlu0 %v655, 1
        %v682 = vpop.permute.xlu0 %681
        %v683 = vsel %vm334, %v680, %v682
        %v684 = vsel %vm334, %v682, %v680
        %685 = vrot.lane.b32.xlu0 %v654, 127
        %v686 = vpop.permute.xlu0 %685
        %687 = vrot.lane.b32.xlu0 %v655, 127
        %v688 = vpop.permute.xlu0 %687
        %v689 = vsel %vm341, %v686, %v688
        %v690 = vsel %vm341, %v688, %v686
        %691 = vrot.lane.b32.xlu0 %v654, 113
        %v692 = vpop.permute.xlu0 %691
        %693 = vrot.lane.b32.xlu0 %v655, 113
        %v694 = vpop.permute.xlu0 %693
        %v695 = vsel %vm348, %v692, %v694
        %v696 = vsel %vm348, %v694, %v692
        %697 = vrot.lane.b32.xlu0 %v654, 112
        %v698 = vpop.permute.xlu0 %697
        %699 = vrot.lane.b32.xlu0 %v655, 112
        %v700 = vpop.permute.xlu0 %699
        %v701 = vsel %vm355, %v698, %v700
        %v702 = vsel %vm355, %v700, %v698
        %703 = vrot.lane.b32.xlu0 %v654, 111
        %v704 = vpop.permute.xlu0 %703
        %705 = vrot.lane.b32.xlu0 %v655, 111
        %v706 = vpop.permute.xlu0 %705
        %v707 = vsel %vm362, %v704, %v706
        %v708 = vsel %vm362, %v706, %v704
        %v709 = vmul.f32 %v666, %v365
        %v710 = vmul.f32 %v665, %v366
        %v711 = vmul.f32 %v672, %v367
        %v712 = vmul.f32 %v671, %v368
        %v713 = vmul.f32 %v678, %v369
        %v714 = vmul.f32 %v677, %v370
        %v715 = vmul.f32 %v684, %v371
        %v716 = vmul.f32 %v683, %v372
        %v717 = vmul.f32 %v654, %v373
        %v718 = vmul.f32 %v655, %v374
        %v719 = vmul.f32 %v689, %v375
        %v720 = vmul.f32 %v690, %v376
        %v721 = vmul.f32 %v695, %v377
        %v722 = vmul.f32 %v696, %v378
        %v723 = vmul.f32 %v701, %v379
        %v724 = vmul.f32 %v702, %v380
        %v725 = vmul.f32 %v707, %v381
        %v726 = vmul.f32 %v708, %v382
        %727 = vmatprep.subr.mxu0 %v710
        %728 = vmatpush1.msra.mxu0 %v709
        %729 = vmatprep.subr.mxu0 %v712
        %730 = vmatpush1.msra.mxu0 %v711
        %731 = vmatprep.subr.mxu0 %v714
        %732 = vmatpush1.msra.mxu0 %v713
        %733 = vmatprep.subr.mxu0 %v716
        %734 = vmatpush1.msra.mxu0 %v715
        %735 = vmatprep.subr.mxu0 %v718
        %736 = vmatpush1.msra.mxu0 %v717
        %737 = vmatprep.subr.mxu0 %v720
        %738 = vmatpush1.msra.mxu0 %v719
        %739 = vmatprep.subr.mxu0 %v722
        %740 = vmatpush1.msra.mxu0 %v721
        %741 = vmatprep.subr.mxu0 %v724
        %742 = vmatpush1.msra.mxu0 %v723
        %743 = vmatprep.subr.mxu0 %v726
        %744 = vmatpush1.msra.mxu0 %v725
        %745 = vmatprep.subr.mxu0 0.0
        %746 = vmatpush1.msra.mxu0 0.0
        %747 = vmatprep.subr.mxu0 0.0
        %748 = vmatpush1.msra.mxu0 0.0
        %749 = vmatprep.subr.mxu0 0.0
        %750 = vmatpush1.msra.mxu0 0.0
        %751 = vmatprep.subr.mxu0 0.0
        %752 = vmatpush1.msra.mxu0 0.0
        %753 = vmatprep.subr.mxu0 0.0
        %754 = vmatpush1.msra.mxu0 0.0
        %755 = vmatprep.subr.mxu0 0.0
        %756 = vmatpush1.msra.mxu0 0.0
        %757 = vmatprep.subr.mxu0 0.0
        %758 = vmatpush1.msra.mxu0 0.0
        %759 = vmatprep.subr.mxu0 0.0
        %760 = vmatpush1.msra.mxu0 0.0
        %761 = vmatprep.subr.mxu0 0.0
        %762 = vmatpush1.msra.mxu0 0.0
        %763 = vmatprep.subr.mxu0 0.0
        %764 = vmatpush1.msra.mxu0 0.0
        %765 = vmatprep.subr.mxu0 0.0
        %766 = vmatpush1.msra.mxu0 0.0
        %767 = vmatprep.subr.mxu0 0.0
        %768 = vmatpush1.msra.mxu0 0.0
        %769 = vmatprep.subr.mxu0 0.0
        %770 = vmatpush1.msra.mxu0 0.0
        %771 = vmatprep.subr.mxu0 0.0
        %772 = vmatpush1.msra.mxu0 0.0
        %773 = vmatprep.subr.mxu0 0.0
        %774 = vmatpush1.msra.mxu0 0.0
        %775 = vmatprep.subr.mxu0 0.0
        %776 = vmatpush1.msra.mxu0 0.0
        %777 = vmatprep.subr.mxu0 0.0
        %778 = vmatpush1.msra.mxu0 0.0
        %779 = vmatprep.subr.mxu0 0.0
        %780 = vmatpush1.msra.mxu0 0.0
        %781 = vmatprep.subr.mxu0 0.0
        %782 = vmatpush1.msra.mxu0 0.0
        %783 = vmatprep.subr.mxu0 0.0
        %784 = vmatpush1.msra.mxu0 0.0
        %785 = vmatprep.subr.mxu0 0.0
        %786 = vmatpush1.msra.mxu0 0.0
        %787 = vmatprep.subr.mxu0 0.0
        %788 = vmatpush1.msra.mxu0 0.0
        %789 = vmatprep.subr.mxu0 0.0
        %790 = vmatpush1.msra.mxu0 0.0
        %791 = vmatprep.mubr.f32.mxu0 0.0
        %792 = vmatmul.mubr.f32.gmra.mrb[0].mxu0 %v403
        %v793 = vpop.f32.mrb[0].mxu0
        %v794 = vadd.f32 %v298, %v793
        %v795 = vpop.f32.mrb[0].mxu0
        %v796 = vadd.f32 %v298, %v795
        %797 = vdwg.mxu0
        %v798 = vstv %s656
        %v799 = vadd.f32 %v794, %v798
        %v800 = vadd.f32 %v796, %v798
        %v801 = vstv %s658
        %v802 = vmul.f32 %v801, %v799
        %v803 = vmul.f32 %v801, %v800
        %v804 = vsub.f32 %v654, %v802
        %v805 = vsub.f32 %v655, %v803
        %v806 = vstv %s657
        %v807 = vmul.f32 %v804, %v806
        %v808 = vmul.f32 %v805, %v806
        %v809 = vstv %s659
        %v810 = vmul.f32 %v809, %v807
        %v811 = vmul.f32 %v809, %v808
        %v812 = vstv %s660
        %v813 = vmul.f32 %v812, %v799
        %v814 = vmul.f32 %v812, %v800
        %v815 = vadd.f32 %v810, %v813
        %v816 = vadd.f32 %v811, %v814
        %s817 = sld [smem:[#allocation2 + $0xf]]
        %s818 = sld [smem:[#allocation2 + $0x10]]
        %s819 = sld [smem:[#allocation2 + $0x11]]
        %s820 = sld [smem:[#allocation2 + $0x12]]
        %s821 = sld [smem:[#allocation2 + $0x13]]
        %822 = vrot.lane.b32.xlu0 %v815, 17
        %v823 = vpop.permute.xlu0 %822
        %824 = vrot.lane.b32.xlu0 %v816, 17
        %v825 = vpop.permute.xlu0 %824
        %v826 = vsel %vm313, %v823, %v825
        %v827 = vsel %vm313, %v825, %v823
        %828 = vrot.lane.b32.xlu0 %v815, 16
        %v829 = vpop.permute.xlu0 %828
        %830 = vrot.lane.b32.xlu0 %v816, 16
        %v831 = vpop.permute.xlu0 %830
        %v832 = vsel %vm320, %v829, %v831
        %v833 = vsel %vm320, %v831, %v829
        %834 = vrot.lane.b32.xlu0 %v815, 15
        %v835 = vpop.permute.xlu0 %834
        %836 = vrot.lane.b32.xlu0 %v816, 15
        %v837 = vpop.permute.xlu0 %836
        %v838 = vsel %vm327, %v835, %v837
        %v839 = vsel %vm327, %v837, %v835
        %840 = vrot.lane.b32.xlu0 %v815, 1
        %v841 = vpop.permute.xlu0 %840
        %842 = vrot.lane.b32.xlu0 %v816, 1
        %v843 = vpop.permute.xlu0 %842
        %v844 = vsel %vm334, %v841, %v843
        %v845 = vsel %vm334, %v843, %v841
        %846 = vrot.lane.b32.xlu0 %v815, 127
        %v847 = vpop.permute.xlu0 %846
        %848 = vrot.lane.b32.xlu0 %v816, 127
        %v849 = vpop.permute.xlu0 %848
        %v850 = vsel %vm341, %v847, %v849
        %v851 = vsel %vm341, %v849, %v847
        %852 = vrot.lane.b32.xlu0 %v815, 113
        %v853 = vpop.permute.xlu0 %852
        %854 = vrot.lane.b32.xlu0 %v816, 113
        %v855 = vpop.permute.xlu0 %854
        %v856 = vsel %vm348, %v853, %v855
        %v857 = vsel %vm348, %v855, %v853
        %858 = vrot.lane.b32.xlu0 %v815, 112
        %v859 = vpop.permute.xlu0 %858
        %860 = vrot.lane.b32.xlu0 %v816, 112
        %v861 = vpop.permute.xlu0 %860
        %v862 = vsel %vm355, %v859, %v861
        %v863 = vsel %vm355, %v861, %v859
        %864 = vrot.lane.b32.xlu0 %v815, 111
        %v865 = vpop.permute.xlu0 %864
        %866 = vrot.lane.b32.xlu0 %v816, 111
        %v867 = vpop.permute.xlu0 %866
        %v868 = vsel %vm362, %v865, %v867
        %v869 = vsel %vm362, %v867, %v865
        %v870 = vmul.f32 %v827, %v365
        %v871 = vmul.f32 %v826, %v366
        %v872 = vmul.f32 %v833, %v367
        %v873 = vmul.f32 %v832, %v368
        %v874 = vmul.f32 %v839, %v369
        %v875 = vmul.f32 %v838, %v370
        %v876 = vmul.f32 %v845, %v371
        %v877 = vmul.f32 %v844, %v372
        %v878 = vmul.f32 %v815, %v373
        %v879 = vmul.f32 %v816, %v374
        %v880 = vmul.f32 %v850, %v375
        %v881 = vmul.f32 %v851, %v376
        %v882 = vmul.f32 %v856, %v377
        %v883 = vmul.f32 %v857, %v378
        %v884 = vmul.f32 %v862, %v379
        %v885 = vmul.f32 %v863, %v380
        %v886 = vmul.f32 %v868, %v381
        %v887 = vmul.f32 %v869, %v382
        %888 = vmatprep.subr.mxu0 %v871
        %889 = vmatpush1.msra.mxu0 %v870
        %890 = vmatprep.subr.mxu0 %v873
        %891 = vmatpush1.msra.mxu0 %v872
        %892 = vmatprep.subr.mxu0 %v875
        %893 = vmatpush1.msra.mxu0 %v874
        %894 = vmatprep.subr.mxu0 %v877
        %895 = vmatpush1.msra.mxu0 %v876
        %896 = vmatprep.subr.mxu0 %v879
        %897 = vmatpush1.msra.mxu0 %v878
        %898 = vmatprep.subr.mxu0 %v881
        %899 = vmatpush1.msra.mxu0 %v880
        %900 = vmatprep.subr.mxu0 %v883
        %901 = vmatpush1.msra.mxu0 %v882
        %902 = vmatprep.subr.mxu0 %v885
        %903 = vmatpush1.msra.mxu0 %v884
        %904 = vmatprep.subr.mxu0 %v887
        %905 = vmatpush1.msra.mxu0 %v886
        %906 = vmatprep.subr.mxu0 0.0
        %907 = vmatpush1.msra.mxu0 0.0
        %908 = vmatprep.subr.mxu0 0.0
        %909 = vmatpush1.msra.mxu0 0.0
        %910 = vmatprep.subr.mxu0 0.0
        %911 = vmatpush1.msra.mxu0 0.0
        %912 = vmatprep.subr.mxu0 0.0
        %913 = vmatpush1.msra.mxu0 0.0
        %914 = vmatprep.subr.mxu0 0.0
        %915 = vmatpush1.msra.mxu0 0.0
        %916 = vmatprep.subr.mxu0 0.0
        %917 = vmatpush1.msra.mxu0 0.0
        %918 = vmatprep.subr.mxu0 0.0
        %919 = vmatpush1.msra.mxu0 0.0
        %920 = vmatprep.subr.mxu0 0.0
        %921 = vmatpush1.msra.mxu0 0.0
        %922 = vmatprep.subr.mxu0 0.0
        %923 = vmatpush1.msra.mxu0 0.0
        %924 = vmatprep.subr.mxu0 0.0
        %925 = vmatpush1.msra.mxu0 0.0
        %926 = vmatprep.subr.mxu0 0.0
        %927 = vmatpush1.msra.mxu0 0.0
        %928 = vmatprep.subr.mxu0 0.0
        %929 = vmatpush1.msra.mxu0 0.0
        %930 = vmatprep.subr.mxu0 0.0
        %931 = vmatpush1.msra.mxu0 0.0
        %932 = vmatprep.subr.mxu0 0.0
        %933 = vmatpush1.msra.mxu0 0.0
        %934 = vmatprep.subr.mxu0 0.0
        %935 = vmatpush1.msra.mxu0 0.0
        %936 = vmatprep.subr.mxu0 0.0
        %937 = vmatpush1.msra.mxu0 0.0
        %938 = vmatprep.subr.mxu0 0.0
        %939 = vmatpush1.msra.mxu0 0.0
        %940 = vmatprep.subr.mxu0 0.0
        %941 = vmatpush1.msra.mxu0 0.0
        %942 = vmatprep.subr.mxu0 0.0
        %943 = vmatpush1.msra.mxu0 0.0
        %944 = vmatprep.subr.mxu0 0.0
        %945 = vmatpush1.msra.mxu0 0.0
        %946 = vmatprep.subr.mxu0 0.0
        %947 = vmatpush1.msra.mxu0 0.0
        %948 = vmatprep.subr.mxu0 0.0
        %949 = vmatpush1.msra.mxu0 0.0
        %950 = vmatprep.subr.mxu0 0.0
        %951 = vmatpush1.msra.mxu0 0.0
        %952 = vmatprep.mubr.f32.mxu0 0.0
        %953 = vmatmul.mubr.f32.gmra.mrb[0].mxu0 %v403
        %v954 = vpop.f32.mrb[0].mxu0
        %v955 = vadd.f32 %v298, %v954
        %v956 = vpop.f32.mrb[0].mxu0
        %v957 = vadd.f32 %v298, %v956
        %958 = vdwg.mxu0
        %v959 = vstv %s817
        %v960 = vadd.f32 %v955, %v959
        %v961 = vadd.f32 %v957, %v959
        %v962 = vstv %s819
        %v963 = vmul.f32 %v962, %v960
        %v964 = vmul.f32 %v962, %v961
        %v965 = vsub.f32 %v815, %v963
        %v966 = vsub.f32 %v816, %v964
        %v967 = vstv %s818
        %v968 = vmul.f32 %v965, %v967
        %v969 = vmul.f32 %v966, %v967
        %v970 = vstv %s820
        %v971 = vmul.f32 %v970, %v968
        %v972 = vmul.f32 %v970, %v969
        %v973 = vstv %s821
        %v974 = vmul.f32 %v973, %v960
        %v975 = vmul.f32 %v973, %v961
        %v976 = vadd.f32 %v971, %v974
        %v977 = vadd.f32 %v972, %v975
        %s978 = sld [smem:[#allocation2 + $0x14]]
        %s979 = sld [smem:[#allocation2 + $0x15]]
        %s980 = sld [smem:[#allocation2 + $0x16]]
        %s981 = sld [smem:[#allocation2 + $0x17]]
        %s982 = sld [smem:[#allocation2 + $0x18]]
        %983 = vrot.lane.b32.xlu0 %v976, 17
        %v984 = vpop.permute.xlu0 %983
        %985 = vrot.lane.b32.xlu0 %v977, 17
        %v986 = vpop.permute.xlu0 %985
        %v987 = vsel %vm313, %v984, %v986
        %v988 = vsel %vm313, %v986, %v984
        %989 = vrot.lane.b32.xlu0 %v976, 16
        %v990 = vpop.permute.xlu0 %989
        %991 = vrot.lane.b32.xlu0 %v977, 16
        %v992 = vpop.permute.xlu0 %991
        %v993 = vsel %vm320, %v990, %v992
        %v994 = vsel %vm320, %v992, %v990
        %995 = vrot.lane.b32.xlu0 %v976, 15
        %v996 = vpop.permute.xlu0 %995
        %997 = vrot.lane.b32.xlu0 %v977, 15
        %v998 = vpop.permute.xlu0 %997
        %v999 = vsel %vm327, %v996, %v998
        %v1000 = vsel %vm327, %v998, %v996
        %1001 = vrot.lane.b32.xlu0 %v976, 1
        %v1002 = vpop.permute.xlu0 %1001
        %1003 = vrot.lane.b32.xlu0 %v977, 1
        %v1004 = vpop.permute.xlu0 %1003
        %v1005 = vsel %vm334, %v1002, %v1004
        %v1006 = vsel %vm334, %v1004, %v1002
        %1007 = vrot.lane.b32.xlu0 %v976, 127
        %v1008 = vpop.permute.xlu0 %1007
        %1009 = vrot.lane.b32.xlu0 %v977, 127
        %v1010 = vpop.permute.xlu0 %1009
        %v1011 = vsel %vm341, %v1008, %v1010
        %v1012 = vsel %vm341, %v1010, %v1008
        %1013 = vrot.lane.b32.xlu0 %v976, 113
        %v1014 = vpop.permute.xlu0 %1013
        %1015 = vrot.lane.b32.xlu0 %v977, 113
        %v1016 = vpop.permute.xlu0 %1015
        %v1017 = vsel %vm348, %v1014, %v1016
        %v1018 = vsel %vm348, %v1016, %v1014
        %1019 = vrot.lane.b32.xlu0 %v976, 112
        %v1020 = vpop.permute.xlu0 %1019
        %1021 = vrot.lane.b32.xlu0 %v977, 112
        %v1022 = vpop.permute.xlu0 %1021
        %v1023 = vsel %vm355, %v1020, %v1022
        %v1024 = vsel %vm355, %v1022, %v1020
        %1025 = vrot.lane.b32.xlu0 %v976, 111
        %v1026 = vpop.permute.xlu0 %1025
        %1027 = vrot.lane.b32.xlu0 %v977, 111
        %v1028 = vpop.permute.xlu0 %1027
        %v1029 = vsel %vm362, %v1026, %v1028
        %v1030 = vsel %vm362, %v1028, %v1026
        %v1031 = vmul.f32 %v988, %v365
        %v1032 = vmul.f32 %v987, %v366
        %v1033 = vmul.f32 %v994, %v367
        %v1034 = vmul.f32 %v993, %v368
        %v1035 = vmul.f32 %v1000, %v369
        %v1036 = vmul.f32 %v999, %v370
        %v1037 = vmul.f32 %v1006, %v371
        %v1038 = vmul.f32 %v1005, %v372
        %v1039 = vmul.f32 %v976, %v373
        %v1040 = vmul.f32 %v977, %v374
        %v1041 = vmul.f32 %v1011, %v375
        %v1042 = vmul.f32 %v1012, %v376
        %v1043 = vmul.f32 %v1017, %v377
        %v1044 = vmul.f32 %v1018, %v378
        %v1045 = vmul.f32 %v1023, %v379
        %v1046 = vmul.f32 %v1024, %v380
        %v1047 = vmul.f32 %v1029, %v381
        %v1048 = vmul.f32 %v1030, %v382
        %1049 = vmatprep.subr.mxu0 %v1032
        %1050 = vmatpush1.msra.mxu0 %v1031
        %1051 = vmatprep.subr.mxu0 %v1034
        %1052 = vmatpush1.msra.mxu0 %v1033
        %1053 = vmatprep.subr.mxu0 %v1036
        %1054 = vmatpush1.msra.mxu0 %v1035
        %1055 = vmatprep.subr.mxu0 %v1038
        %1056 = vmatpush1.msra.mxu0 %v1037
        %1057 = vmatprep.subr.mxu0 %v1040
        %1058 = vmatpush1.msra.mxu0 %v1039
        %1059 = vmatprep.subr.mxu0 %v1042
        %1060 = vmatpush1.msra.mxu0 %v1041
        %1061 = vmatprep.subr.mxu0 %v1044
        %1062 = vmatpush1.msra.mxu0 %v1043
        %1063 = vmatprep.subr.mxu0 %v1046
        %1064 = vmatpush1.msra.mxu0 %v1045
        %1065 = vmatprep.subr.mxu0 %v1048
        %1066 = vmatpush1.msra.mxu0 %v1047
        %1067 = vmatprep.subr.mxu0 0.0
        %1068 = vmatpush1.msra.mxu0 0.0
        %1069 = vmatprep.subr.mxu0 0.0
        %1070 = vmatpush1.msra.mxu0 0.0
        %1071 = vmatprep.subr.mxu0 0.0
        %1072 = vmatpush1.msra.mxu0 0.0
        %1073 = vmatprep.subr.mxu0 0.0
        %1074 = vmatpush1.msra.mxu0 0.0
        %1075 = vmatprep.subr.mxu0 0.0
        %1076 = vmatpush1.msra.mxu0 0.0
        %1077 = vmatprep.subr.mxu0 0.0
        %1078 = vmatpush1.msra.mxu0 0.0
        %1079 = vmatprep.subr.mxu0 0.0
        %1080 = vmatpush1.msra.mxu0 0.0
        %1081 = vmatprep.subr.mxu0 0.0
        %1082 = vmatpush1.msra.mxu0 0.0
        %1083 = vmatprep.subr.mxu0 0.0
        %1084 = vmatpush1.msra.mxu0 0.0
        %1085 = vmatprep.subr.mxu0 0.0
        %1086 = vmatpush1.msra.mxu0 0.0
        %1087 = vmatprep.subr.mxu0 0.0
        %1088 = vmatpush1.msra.mxu0 0.0
        %1089 = vmatprep.subr.mxu0 0.0
        %1090 = vmatpush1.msra.mxu0 0.0
        %1091 = vmatprep.subr.mxu0 0.0
        %1092 = vmatpush1.msra.mxu0 0.0
        %1093 = vmatprep.subr.mxu0 0.0
        %1094 = vmatpush1.msra.mxu0 0.0
        %1095 = vmatprep.subr.mxu0 0.0
        %1096 = vmatpush1.msra.mxu0 0.0
        %1097 = vmatprep.subr.mxu0 0.0
        %1098 = vmatpush1.msra.mxu0 0.0
        %1099 = vmatprep.subr.mxu0 0.0
        %1100 = vmatpush1.msra.mxu0 0.0
        %1101 = vmatprep.subr.mxu0 0.0
        %1102 = vmatpush1.msra.mxu0 0.0
        %1103 = vmatprep.subr.mxu0 0.0
        %1104 = vmatpush1.msra.mxu0 0.0
        %1105 = vmatprep.subr.mxu0 0.0
        %1106 = vmatpush1.msra.mxu0 0.0
        %1107 = vmatprep.subr.mxu0 0.0
        %1108 = vmatpush1.msra.mxu0 0.0
        %1109 = vmatprep.subr.mxu0 0.0
        %1110 = vmatpush1.msra.mxu0 0.0
        %1111 = vmatprep.subr.mxu0 0.0
        %1112 = vmatpush1.msra.mxu0 0.0
        %1113 = vmatprep.mubr.f32.mxu0 0.0
        %1114 = vmatmul.mubr.f32.gmra.mrb[0].mxu0 %v403
        %v1115 = vpop.f32.mrb[0].mxu0
        %v1116 = vadd.f32 %v298, %v1115
        %v1117 = vpop.f32.mrb[0].mxu0
        %v1118 = vadd.f32 %v298, %v1117
        %1119 = vdwg.mxu0
        %v1120 = vstv %s978
        %v1121 = vadd.f32 %v1116, %v1120
        %v1122 = vadd.f32 %v1118, %v1120
        %v1123 = vstv %s980
        %v1124 = vmul.f32 %v1123, %v1121
        %v1125 = vmul.f32 %v1123, %v1122
        %v1126 = vsub.f32 %v976, %v1124
        %v1127 = vsub.f32 %v977, %v1125
        %v1128 = vstv %s979
        %v1129 = vmul.f32 %v1126, %v1128
        %v1130 = vmul.f32 %v1127, %v1128
        %v1131 = vstv %s981
        %v1132 = vmul.f32 %v1131, %v1129
        %v1133 = vmul.f32 %v1131, %v1130
        %v1134 = vstv %s982
        %v1135 = vmul.f32 %v1134, %v1121
        %v1136 = vmul.f32 %v1134, %v1122
        %v1137 = vadd.f32 %v1132, %v1135
        %v1138 = vadd.f32 %v1133, %v1136
        %v1139 = vmul.f32 %v1137, 5.4899807
        %v1140 = vmul.f32 %v1138, 5.4899807
        %v1141 = vld [vmem:[%s6] sm:$0x7]
        %1143 = vset.pattern.permute.xlu0 0
        %1144 = vperm.xlu0 %1143, %v1141
        %v1145 = vpop.permute.xlu0 %1144
        %v1147 = vld [vmem:[%s5] sm:$0x7]
        %1148 = vrot.lane.b32.xlu0 %v1139, 17
        %v1149 = vpop.permute.xlu0 %1148
        %1150 = vrot.lane.b32.xlu0 %v1140, 17
        %v1151 = vpop.permute.xlu0 %1150
        %v1152 = vsel %vm313, %v1149, %v1151
        %v1153 = vsel %vm313, %v1151, %v1149
        %1154 = vrot.lane.b32.xlu0 %v1139, 16
        %v1155 = vpop.permute.xlu0 %1154
        %1156 = vrot.lane.b32.xlu0 %v1140, 16
        %v1157 = vpop.permute.xlu0 %1156
        %v1158 = vsel %vm320, %v1155, %v1157
        %v1159 = vsel %vm320, %v1157, %v1155
        %1160 = vrot.lane.b32.xlu0 %v1139, 15
        %v1161 = vpop.permute.xlu0 %1160
        %1162 = vrot.lane.b32.xlu0 %v1140, 15
        %v1163 = vpop.permute.xlu0 %1162
        %v1164 = vsel %vm327, %v1161, %v1163
        %v1165 = vsel %vm327, %v1163, %v1161
        %1166 = vrot.lane.b32.xlu0 %v1139, 1
        %v1167 = vpop.permute.xlu0 %1166
        %1168 = vrot.lane.b32.xlu0 %v1140, 1
        %v1169 = vpop.permute.xlu0 %1168
        %v1170 = vsel %vm334, %v1167, %v1169
        %v1171 = vsel %vm334, %v1169, %v1167
        %1172 = vrot.lane.b32.xlu0 %v1139, 127
        %v1173 = vpop.permute.xlu0 %1172
        %1174 = vrot.lane.b32.xlu0 %v1140, 127
        %v1175 = vpop.permute.xlu0 %1174
        %v1176 = vsel %vm341, %v1173, %v1175
        %v1177 = vsel %vm341, %v1175, %v1173
        %1178 = vrot.lane.b32.xlu0 %v1139, 113
        %v1179 = vpop.permute.xlu0 %1178
        %1180 = vrot.lane.b32.xlu0 %v1140, 113
        %v1181 = vpop.permute.xlu0 %1180
        %v1182 = vsel %vm348, %v1179, %v1181
        %v1183 = vsel %vm348, %v1181, %v1179
        %1184 = vrot.lane.b32.xlu0 %v1139, 112
        %v1185 = vpop.permute.xlu0 %1184
        %1186 = vrot.lane.b32.xlu0 %v1140, 112
        %v1187 = vpop.permute.xlu0 %1186
        %v1188 = vsel %vm355, %v1185, %v1187
        %v1189 = vsel %vm355, %v1187, %v1185
        %1190 = vrot.lane.b32.xlu0 %v1139, 111
        %v1191 = vpop.permute.xlu0 %1190
        %1192 = vrot.lane.b32.xlu0 %v1140, 111
        %v1193 = vpop.permute.xlu0 %1192
        %v1194 = vsel %vm362, %v1191, %v1193
        %v1195 = vsel %vm362, %v1193, %v1191
        %v1196 = vmul.f32 %v1153, %v365
        %v1197 = vmul.f32 %v1152, %v366
        %v1198 = vmul.f32 %v1159, %v367
        %v1199 = vmul.f32 %v1158, %v368
        %v1200 = vmul.f32 %v1165, %v369
        %v1201 = vmul.f32 %v1164, %v370
        %v1202 = vmul.f32 %v1171, %v371
        %v1203 = vmul.f32 %v1170, %v372
        %v1204 = vmul.f32 %v1139, %v373
        %v1205 = vmul.f32 %v1140, %v374
        %v1206 = vmul.f32 %v1176, %v375
        %v1207 = vmul.f32 %v1177, %v376
        %v1208 = vmul.f32 %v1182, %v377
        %v1209 = vmul.f32 %v1183, %v378
        %v1210 = vmul.f32 %v1188, %v379
        %v1211 = vmul.f32 %v1189, %v380
        %v1212 = vmul.f32 %v1194, %v381
        %v1213 = vmul.f32 %v1195, %v382
        %v1215 = vsel %vm401, %v1147, 0
        %1217 = vmatprep.subr.mxu0 %v1197
        %1218 = vmatpush1.msra.mxu0 %v1196
        %1219 = vmatprep.subr.mxu0 %v1199
        %1220 = vmatpush1.msra.mxu0 %v1198
        %1221 = vmatprep.subr.mxu0 %v1201
        %1222 = vmatpush1.msra.mxu0 %v1200
        %1223 = vmatprep.subr.mxu0 %v1203
        %1224 = vmatpush1.msra.mxu0 %v1202
        %1225 = vmatprep.subr.mxu0 %v1205
        %1226 = vmatpush1.msra.mxu0 %v1204
        %1227 = vmatprep.subr.mxu0 %v1207
        %1228 = vmatpush1.msra.mxu0 %v1206
        %1229 = vmatprep.subr.mxu0 %v1209
        %1230 = vmatpush1.msra.mxu0 %v1208
        %1231 = vmatprep.subr.mxu0 %v1211
        %1232 = vmatpush1.msra.mxu0 %v1210
        %1233 = vmatprep.subr.mxu0 %v1213
        %1234 = vmatpush1.msra.mxu0 %v1212
        %1235 = vmatprep.subr.mxu0 0.0
        %1236 = vmatpush1.msra.mxu0 0.0
        %1237 = vmatprep.subr.mxu0 0.0
        %1238 = vmatpush1.msra.mxu0 0.0
        %1239 = vmatprep.subr.mxu0 0.0
        %1240 = vmatpush1.msra.mxu0 0.0
        %1241 = vmatprep.subr.mxu0 0.0
        %1242 = vmatpush1.msra.mxu0 0.0
        %1243 = vmatprep.subr.mxu0 0.0
        %1244 = vmatpush1.msra.mxu0 0.0
        %1245 = vmatprep.subr.mxu0 0.0
        %1246 = vmatpush1.msra.mxu0 0.0
        %1247 = vmatprep.subr.mxu0 0.0
        %1248 = vmatpush1.msra.mxu0 0.0
        %1249 = vmatprep.subr.mxu0 0.0
        %1250 = vmatpush1.msra.mxu0 0.0
        %1251 = vmatprep.subr.mxu0 0.0
        %1252 = vmatpush1.msra.mxu0 0.0
        %1253 = vmatprep.subr.mxu0 0.0
        %1254 = vmatpush1.msra.mxu0 0.0
        %1255 = vmatprep.subr.mxu0 0.0
        %1256 = vmatpush1.msra.mxu0 0.0
        %1257 = vmatprep.subr.mxu0 0.0
        %1258 = vmatpush1.msra.mxu0 0.0
        %1259 = vmatprep.subr.mxu0 0.0
        %1260 = vmatpush1.msra.mxu0 0.0
        %1261 = vmatprep.subr.mxu0 0.0
        %1262 = vmatpush1.msra.mxu0 0.0
        %1263 = vmatprep.subr.mxu0 0.0
        %1264 = vmatpush1.msra.mxu0 0.0
        %1265 = vmatprep.subr.mxu0 0.0
        %1266 = vmatpush1.msra.mxu0 0.0
        %1267 = vmatprep.subr.mxu0 0.0
        %1268 = vmatpush1.msra.mxu0 0.0
        %1269 = vmatprep.subr.mxu0 0.0
        %1270 = vmatpush1.msra.mxu0 0.0
        %1271 = vmatprep.subr.mxu0 0.0
        %1272 = vmatpush1.msra.mxu0 0.0
        %1273 = vmatprep.subr.mxu0 0.0
        %1274 = vmatpush1.msra.mxu0 0.0
        %1275 = vmatprep.subr.mxu0 0.0
        %1276 = vmatpush1.msra.mxu0 0.0
        %1277 = vmatprep.subr.mxu0 0.0
        %1278 = vmatpush1.msra.mxu0 0.0
        %1279 = vmatprep.subr.mxu0 0.0
        %1280 = vmatpush1.msra.mxu0 0.0
        %1281 = vmatprep.mubr.f32.mxu0 0.0
        %1282 = vmatmul.mubr.f32.gmra.mrb[0].mxu0 %v1215
        %v1283 = vpop.f32.mrb[0].mxu0
        %v1284 = vadd.f32 %v1145, %v1283
        %v1285 = vpop.f32.mrb[0].mxu0
        %v1286 = vadd.f32 %v1145, %v1285
        %1287 = vdwg.mxu0
        %v1288 = vtanh.pop %v1284
        %v1289 = vtanh.pop %v1286
        %v1290 = vadd.f32 %v1288, 1.0
        %v1291 = vadd.f32 %v1289, 1.0
        %v1292 = vmul.f32 %v1290, 0.5
        %v1293 = vmul.f32 %v1291, 0.5
        %v1296 = vcombine.low %v1292, %v1293
        %1298 = vst [vmem:[%s292] sm:$0x77] %v1296
        %p1299 = scmp.lt.s32.totalorder %s19, 1
        %s1300 = scalar_select %p1299, %s19, 1
        %s1301 = smul.addr %s1300, 2
        %s1302 = smul.addr %s1301, 4
        %s1303 = scalar_lea.vmem %s7, %s1302
        // Predicated region
        $region53: #{latentdiff_forward.1} parent=47 // pred_check
          %p1304 = pneg %p189
        $region54: #{latentdiff_forward.1} parent=47 // pred_check_branch
          %1306 = sbr.rel (%p1304) target = $region56
        $region55: #{latentdiff_forward.1} parent=47 // pred_region
          _
        $region56: #{latentdiff_forward.1} parent=47 // pred_fallthru
          _
      $region48: #{latentdiff_forward.1} parent=5 // pred_fallthru
        _
      %p1307 = scmp.le.s32.totalorder 2, %s14
      // Predicated region
      $region57: #{latentdiff_forward.1} parent=5 // pred_check
        %p1308 = pneg %p1307
      $region58: #{latentdiff_forward.1} parent=5 // pred_check_branch
        %1310 = sbr.rel (%p1308) target = $region60
      $region59: #{latentdiff_forward.1} parent=5 // pred_region
        %s1311 = ssub.s32 %s14, 2
        // Predicated region
        $region61: #{latentdiff_forward.1} parent=59 // pred_check
          %p1312 = pneg %p195
        $region62: #{latentdiff_forward.1} parent=59 // pred_check_branch
          %1314 = sbr.rel (%p1312) target = $region64
        $region63: #{latentdiff_forward.1} parent=59 // pred_region
          %p1315 = scmp.lt.s32.totalorder %s20, 1
          %s1316 = scalar_select %p1315, %s20, 1
          %s1317 = smul.addr %s1316, 2
          %s1318 = smul.addr %s1317, 4
          %s1319 = scalar_lea.vmem %s7, %s1318
        $region64: #{latentdiff_forward.1} parent=59 // pred_fallthru
          _
      $region60: #{latentdiff_forward.1} parent=5 // pred_fallthru
        _
    $region6: #{latentdiff_forward.1} parent=1 // loop_footer
      %s18 = sadd.s32 1, %s14
    $region7: #{latentdiff_forward.1} parent=1 // loop_footer_branch
      %13 = sbr.rel target = $region3
    $region8: #{latentdiff_forward.1} parent=1 // loop_exit
      _
    %1320 = vsyncpa [#allocation3], 1
    %s1321 = scalar_lea.sflag [#allocation3], 1
    %1322 = vsyncpa %s1321, 1

</llo_original>
